<compile_context>
chip_gen: v7x
topology: tpu7x:2x2x1
jax: 0.10.0
libtpu: 0.0.40
codegen_flags: <defaults>
</compile_context>

<pallas_src>
import collections
import functools

import jax
import jax.numpy as jnp
import numpy as np
from jax import lax
from jax.experimental import pallas as pl
from jax.experimental.pallas import tpu as pltpu

# ---- problem sizes (small, consistent with an image classifier head) ----
BS = 2            # batch
C = 4             # input channels
H = W = 16        # spatial
HW = H * W        # 256 tokens  -> lane dimension inside the kernel
V = 32            # number of ingredients (code vocabulary)
NC = 10           # num_classes
NC_PAD = 128      # lane-padded class dim for unmasked stores


# =====================================================================
# Fused kernel — IngredientModelWrapper + SchemaNet instance graph
#   per batch element (tokens on lanes):
#     ingredients = softmax_V(W_ing^T x + b)            (V, HW)
#     attn        = sigmoid(w_attn^T x)                 (1, HW)
#     attn_cls    = softmax_tokens(w_cls^T x)           (1, HW)
#     origin_pred = (attn_cls x^T) W_head               (1, NC_PAD)
#     w           = attn * ingredients                  (V, HW)
#     adjacency   = w @ ingredients^T                   (V, V)
#     nodes       = attn @ ingredients^T                (1, V)
# =====================================================================
def fused_kernel(x_ref, wing_ref, bing_ref, wattn_ref, wcls_ref, whead_ref,
                 ing_ref, attn_ref, attn_cls_ref, origin_ref, adj_ref, nodes_ref):
    x = x_ref[0]                                                           # (C, HW)

    # --- ingredient codes: softmax over V (sublane axis) ------------------
    logits = jnp.dot(wing_ref[...], x,
                     preferred_element_type=jnp.float32) + bing_ref[...]   # (V, HW)
    m = jnp.max(logits, axis=0, keepdims=True)
    e = jnp.exp(logits - m)
    ing = e * pl.reciprocal(jnp.sum(e, axis=0, keepdims=True), approx=True)
    ing_ref[0] = ing                                                       # (V, HW)

    # --- spatial attention (sigmoid via EUP tanh, overflow-safe) ----------
    a_logit = jnp.dot(wattn_ref[...], x,
                      preferred_element_type=jnp.float32)                  # (1, HW)
    attn = 0.5 * (jnp.tanh(0.5 * a_logit) + 1.0)
    attn_ref[0] = attn

    # --- class-token attention: softmax over tokens (lane axis) -----------
    c_logit = jnp.dot(wcls_ref[...], x,
                      preferred_element_type=jnp.float32)                  # (1, HW)
    cm = jnp.max(c_logit, axis=1, keepdims=True)
    ce = jnp.exp(c_logit - cm)
    attn_cls = ce * pl.reciprocal(jnp.sum(ce, axis=1, keepdims=True), approx=True)
    attn_cls_ref[0] = attn_cls                                             # (1, HW)

    # --- origin model head (class dim lane-padded to NC_PAD) --------------
    pooled = lax.dot_general(attn_cls, x, (((1,), (1,)), ((), ())),
                             preferred_element_type=jnp.float32)           # (1, C)
    origin_ref[0] = jnp.dot(pooled, whead_ref[...],
                            preferred_element_type=jnp.float32)            # (1, NC_PAD)

    # --- SchemaNet instance graph ------------------------------------------
    w = ing * attn                                                         # (V, HW)
    adj_ref[0] = lax.dot_general(w, ing, (((1,), (1,)), ((), ())),
                                 preferred_element_type=jnp.float32)       # (V, V)
    nodes_ref[0] = lax.dot_general(attn, ing, (((1,), (1,)), ((), ())),
                                   preferred_element_type=jnp.float32)     # (1, V)


def fused_forward(x_chw, wing_t, bing, wattn_t, wcls_t, whead_p):
    return pl.pallas_call(
        fused_kernel,
        out_shape=(
            jax.ShapeDtypeStruct((BS, V, HW), jnp.float32),      # ingredients (V-major)
            jax.ShapeDtypeStruct((BS, 1, HW), jnp.float32),      # attn
            jax.ShapeDtypeStruct((BS, 1, HW), jnp.float32),      # attn_cls
            jax.ShapeDtypeStruct((BS, 1, NC_PAD), jnp.float32),  # origin_pred (padded)
            jax.ShapeDtypeStruct((BS, V, V), jnp.float32),       # instance adjacency
            jax.ShapeDtypeStruct((BS, 1, V), jnp.float32),       # instance node weights
        ),
        grid=(BS,),
        in_specs=[
            pl.BlockSpec((1, C, HW), lambda b: (b, 0, 0)),
            pl.BlockSpec((V, C), lambda b: (0, 0)),
            pl.BlockSpec((V, 1), lambda b: (0, 0)),
            pl.BlockSpec((1, C), lambda b: (0, 0)),
            pl.BlockSpec((1, C), lambda b: (0, 0)),
            pl.BlockSpec((C, NC_PAD), lambda b: (0, 0)),
        ],
        out_specs=(
            pl.BlockSpec((1, V, HW), lambda b: (b, 0, 0)),
            pl.BlockSpec((1, 1, HW), lambda b: (b, 0, 0)),
            pl.BlockSpec((1, 1, HW), lambda b: (b, 0, 0)),
            pl.BlockSpec((1, 1, NC_PAD), lambda b: (b, 0, 0)),
            pl.BlockSpec((1, V, V), lambda b: (b, 0, 0)),
            pl.BlockSpec((1, 1, V), lambda b: (b, 0, 0)),
        ),
        # batch axis parallel: uses both TensorCores on v7x; on v5e/v6e it is
        # a 2-step loop with negligible per-step overhead at these sizes.
        compiler_params=pltpu.CompilerParams(dimension_semantics=("parallel",)),
    )(x_chw, wing_t, bing, wattn_t, wcls_t, whead_p)


# =====================================================================
# SchemaNetPredictor.forward
# =====================================================================
@functools.partial(jax.jit, static_argnames=("requires_graph",))
def schema_net_predictor(x, params, requires_graph=False):
    # NCHW [bs, C, H, W] -> (bs, C, H*W): free reshape, tokens land on lanes.
    x_chw = x.reshape(BS, C, HW).astype(jnp.float32)

    outs = fused_forward(
        x_chw,
        jnp.transpose(params["w_ing"]),                      # (V, C)
        params["b_ing"].reshape(V, 1),                       # (V, 1)
        jnp.transpose(params["w_attn"]),                     # (1, C)
        jnp.transpose(params["w_cls"]),                      # (1, C)
        jnp.pad(params["w_head"], ((0, 0), (0, NC_PAD - NC))),
    )
    ing_t, attn_t, attn_cls_t, origin_p, inst_adj, inst_nodes = outs
    origin_pred = origin_p[:, 0, :NC]   # mirrors the ingredient wrapper output (unused in ret)

    # ---- Matcher: one batched matmul against the class atlas (plain XLA,
    # per perf review; contraction is (BS, V*V) @ (V*V, NC) ~ 20 KFLOP).
    class_adj = params["class_adj"]                          # (NC, V, V), pre-normalized
    class_nodes = params["class_nodes"]                      # (NC, V),    pre-normalized
    adj_flat = inst_adj.reshape(BS, V * V)
    nodes = inst_nodes[:, 0, :]                              # (BS, V)
    a_norm = jnp.sqrt(jnp.sum(adj_flat * adj_flat, axis=1, keepdims=True)) + 1e-6
    n_norm = jnp.sqrt(jnp.sum(nodes * nodes, axis=1, keepdims=True)) + 1e-6
    adj_sim = adj_flat @ class_adj.reshape(NC, V * V).T      # (BS, NC)
    node_sim = nodes @ class_nodes.T                         # (BS, NC)
    pred = adj_sim / a_norm + 0.5 * node_sim / n_norm

    ret = collections.OrderedDict()
    ret["pred"] = pred                                       # [bs, num_classes]
    ret["class_adj"] = class_adj                             # schema_net.get_atlas()
    ret["class_nodes"] = class_nodes
    if requires_graph:
        ret["instance_adj"] = inst_adj                       # [bs, V, V]
        ret["instance_nodes"] = nodes                        # [bs, V]
        ret["ingredients"] = jnp.transpose(ing_t, (0, 2, 1)) # [bs, HW, V]
        ret["attn_cls"] = attn_cls_t[:, 0, :]                # [bs, HW]
    # TODO(synk): the docstring also mentions 'origin_pred'/'codes'/'attribution',
    # but the reference forward() never puts them into `ret`, so we follow the code
    # (origin_pred is still computed to mirror IngredientModelWrapper).
    return ret


def init_params(key):
    ks = jax.random.split(key, 7)
    w_ing = 0.5 * jax.random.normal(ks[0], (C, V), jnp.float32)
    b_ing = 0.1 * jax.random.normal(ks[1], (1, V), jnp.float32)
    w_attn = 0.5 * jax.random.normal(ks[2], (C, 1), jnp.float32)
    w_cls = 0.5 * jax.random.normal(ks[3], (C, 1), jnp.float32)
    w_head = 0.5 * jax.random.normal(ks[4], (C, NC), jnp.float32)
    # class atlas: symmetric non-negative adjacency, Frobenius-normalized per class
    ca = jnp.abs(jax.random.normal(ks[5], (NC, V, V), jnp.float32))
    ca = 0.5 * (ca + jnp.transpose(ca, (0, 2, 1)))
    ca = ca / (jnp.sqrt(jnp.sum(ca * ca, axis=(1, 2), keepdims=True)) + 1e-6)
    cn = jnp.abs(jax.random.normal(ks[6], (NC, V), jnp.float32))
    cn = cn / (jnp.sqrt(jnp.sum(cn * cn, axis=1, keepdims=True)) + 1e-6)
    return {"w_ing": w_ing, "b_ing": b_ing, "w_attn": w_attn, "w_cls": w_cls,
            "w_head": w_head, "class_adj": ca, "class_nodes": cn}


if __name__ == "__main__":
    key = jax.random.PRNGKey(0)
    k_x, k_p = jax.random.split(key)
    x = jax.random.normal(k_x, (BS, C, H, W), jnp.float32)   # NCHW, like PyTorch
    params = init_params(k_p)

    ret = schema_net_predictor(x, params, requires_graph=True)
    jax.block_until_ready(ret["pred"])

    # --- output contract ---
    assert ret["pred"].shape == (BS, NC)
    assert ret["class_adj"].shape == (NC, V, V)
    assert ret["instance_adj"].shape == (BS, V, V)
    assert ret["instance_nodes"].shape == (BS, V)
    assert ret["ingredients"].shape == (BS, HW, V)
    assert ret["attn_cls"].shape == (BS, HW)
    assert bool(jnp.all(jnp.isfinite(ret["pred"])))

    # --- pure-JAX reference (token-major, like the original wrapper layout) ---
    x_tok = jnp.transpose(x, (0, 2, 3, 1)).reshape(BS, HW, C)
    ing_r = jax.nn.softmax(x_tok @ params["w_ing"] + params["b_ing"], axis=-1)
    attn_r = jax.nn.sigmoid(x_tok @ params["w_attn"])
    w_r = ing_r * attn_r
    adj_r = jnp.einsum("bti,btj->bij", w_r, ing_r)
    nodes_r = jnp.sum(w_r, axis=1)
    af = adj_r.reshape(BS, V * V)
    an = jnp.sqrt(jnp.sum(af * af, axis=1, keepdims=True)) + 1e-6
    nn_ = jnp.sqrt(jnp.sum(nodes_r * nodes_r, axis=1, keepdims=True)) + 1e-6
    pred_r = (af @ params["class_adj"].reshape(NC, V * V).T / an
              + 0.5 * nodes_r @ params["class_nodes"].T / nn_)

    np.testing.assert_allclose(np.asarray(ret["ingredients"]), np.asarray(ing_r),
                               atol=5e-3, rtol=5e-3)
    np.testing.assert_allclose(np.asarray(ret["instance_adj"]), np.asarray(adj_r),
                               atol=5e-3, rtol=5e-3)
    np.testing.assert_allclose(np.asarray(ret["pred"]), np.asarray(pred_r),
                               atol=2e-2, rtol=2e-2)
    print("KERNEL_OK")
</pallas_src>

<mosaic_0001>
module attributes {stable_mosaic.version = 11 : i64} {
  func.func @fused_kernel(%arg0: i32, %arg1: memref<1x4x256xf32, #tpu.memory_space<vmem>>, %arg2: memref<32x4xf32, #tpu.memory_space<vmem>>, %arg3: memref<32x1xf32, #tpu.memory_space<vmem>>, %arg4: memref<1x4xf32, #tpu.memory_space<vmem>>, %arg5: memref<1x4xf32, #tpu.memory_space<vmem>>, %arg6: memref<4x128xf32, #tpu.memory_space<vmem>>, %arg7: memref<1x32x256xf32, #tpu.memory_space<vmem>>, %arg8: memref<1x1x256xf32, #tpu.memory_space<vmem>>, %arg9: memref<1x1x256xf32, #tpu.memory_space<vmem>>, %arg10: memref<1x1x128xf32, #tpu.memory_space<vmem>>, %arg11: memref<1x32x32xf32, #tpu.memory_space<vmem>>, %arg12: memref<1x1x32xf32, #tpu.memory_space<vmem>>) attributes {dimension_semantics = [#tpu.dimension_semantics<parallel>], iteration_bounds = array<i64: 2>, scalar_prefetch = 0 : i64, scratch_operands = 0 : i64, tpu.core_type = #tpu.core_type<tc>, window_params = [{transform_indices = @transform_0, window_bounds = array<i64: 1, 4, 256>}, {pipeline_mode = #tpu.pipeline_mode<synchronous>, transform_indices = @transform_1, window_bounds = array<i64: 32, 4>}, {pipeline_mode = #tpu.pipeline_mode<synchronous>, transform_indices = @transform_2, window_bounds = array<i64: 32, 1>}, {pipeline_mode = #tpu.pipeline_mode<synchronous>, transform_indices = @transform_3, window_bounds = array<i64: 1, 4>}, {pipeline_mode = #tpu.pipeline_mode<synchronous>, transform_indices = @transform_4, window_bounds = array<i64: 1, 4>}, {pipeline_mode = #tpu.pipeline_mode<synchronous>, transform_indices = @transform_5, window_bounds = array<i64: 4, 128>}, {transform_indices = @transform_6, window_bounds = array<i64: 1, 32, 256>}, {transform_indices = @transform_7, window_bounds = array<i64: 1, 1, 256>}, {transform_indices = @transform_8, window_bounds = array<i64: 1, 1, 256>}, {transform_indices = @transform_9, window_bounds = array<i64: 1, 1, 128>}, {transform_indices = @transform_10, window_bounds = array<i64: 1, 32, 32>}, {transform_indices = @transform_11, window_bounds = array<i64: 1, 1, 32>}]} {
    %c0 = arith.constant 0 : index
    %c0_0 = arith.constant 0 : index
    %c0_1 = arith.constant 0 : index
    %0 = vector.load %arg1[%c0, %c0_0, %c0_1] : memref<1x4x256xf32, #tpu.memory_space<vmem>>, vector<1x4x256xf32>
    %1 = vector.shape_cast %0 : vector<1x4x256xf32> to vector<4x256xf32>
    %c0_2 = arith.constant 0 : index
    %c0_3 = arith.constant 0 : index
    %2 = vector.load %arg2[%c0_2, %c0_3] : memref<32x4xf32, #tpu.memory_space<vmem>>, vector<32x4xf32>
    %cst = arith.constant dense<0.000000e+00> : vector<32x256xf32>
    %3 = tpu.matmul %2, %1, %cst {dimension_numbers = #tpu.dot_dimension_numbers<[1], [0], [0], [1], [0, 0, 1, 1], [], []>} : vector<32x4xf32>, vector<4x256xf32>, vector<32x256xf32> -> vector<32x256xf32>
    %c0_4 = arith.constant 0 : index
    %c0_5 = arith.constant 0 : index
    %4 = vector.load %arg3[%c0_4, %c0_5] : memref<32x1xf32, #tpu.memory_space<vmem>>, vector<32x1xf32>
    %5 = vector.broadcast %4 : vector<32x1xf32> to vector<32x256xf32>
    %6 = arith.addf %3, %5 : vector<32x256xf32>
    %cst_6 = arith.constant dense<0xFF800000> : vector<256xf32>
    %7 = vector.multi_reduction <maximumf>, %6, %cst_6 [0] : vector<32x256xf32> to vector<256xf32>
    %8 = vector.shape_cast %7 : vector<256xf32> to vector<1x256xf32>
    %9 = vector.broadcast %8 : vector<1x256xf32> to vector<32x256xf32>
    %10 = arith.subf %6, %9 : vector<32x256xf32>
    %11 = math.exp %10 : vector<32x256xf32>
    %cst_7 = arith.constant dense<0.000000e+00> : vector<256xf32>
    %12 = vector.multi_reduction <add>, %11, %cst_7 [0] : vector<32x256xf32> to vector<256xf32>
    %13 = vector.shape_cast %12 : vector<256xf32> to vector<1x256xf32>
    %14 = tpu.reciprocal %13 {approx = true} : vector<1x256xf32> -> vector<1x256xf32>
    %15 = vector.broadcast %14 : vector<1x256xf32> to vector<32x256xf32>
    %16 = arith.mulf %11, %15 : vector<32x256xf32>
    %c0_8 = arith.constant 0 : index
    %c0_9 = arith.constant 0 : index
    %c0_10 = arith.constant 0 : index
    %17 = vector.load %arg7[%c0_8, %c0_9, %c0_10] : memref<1x32x256xf32, #tpu.memory_space<vmem>>, vector<1x32x256xf32>
    %18 = vector.shape_cast %17 : vector<1x32x256xf32> to vector<32x256xf32>
    %19 = vector.shape_cast %16 : vector<32x256xf32> to vector<1x32x256xf32>
    tpu.vector_store %arg7[%c0_8, %c0_9, %c0_10], %19 {strides = array<i32>} : memref<1x32x256xf32, #tpu.memory_space<vmem>>, vector<1x32x256xf32>,
    %c0_11 = arith.constant 0 : index
    %c0_12 = arith.constant 0 : index
    %20 = vector.load %arg4[%c0_11, %c0_12] : memref<1x4xf32, #tpu.memory_space<vmem>>, vector<1x4xf32>
    %cst_13 = arith.constant dense<0.000000e+00> : vector<1x256xf32>
    %21 = tpu.matmul %20, %1, %cst_13 {dimension_numbers = #tpu.dot_dimension_numbers<[1], [0], [0], [1], [0, 0, 1, 1], [], []>} : vector<1x4xf32>, vector<4x256xf32>, vector<1x256xf32> -> vector<1x256xf32>
    %cst_14 = arith.constant 5.000000e-01 : f32
    %22 = vector.broadcast %cst_14 : f32 to vector<1x256xf32>
    %23 = arith.mulf %22, %21 : vector<1x256xf32>
    %24 = math.tanh %23 : vector<1x256xf32>
    %cst_15 = arith.constant 1.000000e+00 : f32
    %25 = vector.broadcast %cst_15 : f32 to vector<1x256xf32>
    %26 = arith.addf %24, %25 : vector<1x256xf32>
    %cst_16 = arith.constant 5.000000e-01 : f32
    %27 = vector.broadcast %cst_16 : f32 to vector<1x256xf32>
    %28 = arith.mulf %27, %26 : vector<1x256xf32>
    %c0_17 = arith.constant 0 : index
    %c0_18 = arith.constant 0 : index
    %c0_19 = arith.constant 0 : index
    %29 = vector.load %arg8[%c0_17, %c0_18, %c0_19] : memref<1x1x256xf32, #tpu.memory_space<vmem>>, vector<1x1x256xf32>
    %30 = vector.shape_cast %29 : vector<1x1x256xf32> to vector<1x256xf32>
    %31 = vector.shape_cast %28 : vector<1x256xf32> to vector<1x1x256xf32>
    tpu.vector_store %arg8[%c0_17, %c0_18, %c0_19], %31 {strides = array<i32>} : memref<1x1x256xf32, #tpu.memory_space<vmem>>, vector<1x1x256xf32>,
    %c0_20 = arith.constant 0 : index
    %c0_21 = arith.constant 0 : index
    %32 = vector.load %arg5[%c0_20, %c0_21] : memref<1x4xf32, #tpu.memory_space<vmem>>, vector<1x4xf32>
    %cst_22 = arith.constant dense<0.000000e+00> : vector<1x256xf32>
    %33 = tpu.matmul %32, %1, %cst_22 {dimension_numbers = #tpu.dot_dimension_numbers<[1], [0], [0], [1], [0, 0, 1, 1], [], []>} : vector<1x4xf32>, vector<4x256xf32>, vector<1x256xf32> -> vector<1x256xf32>
    %cst_23 = arith.constant dense<0xFF800000> : vector<1xf32>
    %34 = vector.multi_reduction <maximumf>, %33, %cst_23 [1] : vector<1x256xf32> to vector<1xf32>
    %35 = vector.shape_cast %34 : vector<1xf32> to vector<1x1xf32>
    %36 = vector.broadcast %35 : vector<1x1xf32> to vector<1x256xf32>
    %37 = arith.subf %33, %36 : vector<1x256xf32>
    %38 = math.exp %37 : vector<1x256xf32>
    %cst_24 = arith.constant dense<0.000000e+00> : vector<1xf32>
    %39 = vector.multi_reduction <add>, %38, %cst_24 [1] : vector<1x256xf32> to vector<1xf32>
    %40 = vector.shape_cast %39 : vector<1xf32> to vector<1x1xf32>
    %41 = tpu.reciprocal %40 {approx = true} : vector<1x1xf32> -> vector<1x1xf32>
    %42 = vector.broadcast %41 : vector<1x1xf32> to vector<1x256xf32>
    %43 = arith.mulf %38, %42 : vector<1x256xf32>
    %c0_25 = arith.constant 0 : index
    %c0_26 = arith.constant 0 : index
    %c0_27 = arith.constant 0 : index
    %44 = vector.load %arg9[%c0_25, %c0_26, %c0_27] : memref<1x1x256xf32, #tpu.memory_space<vmem>>, vector<1x1x256xf32>
    %45 = vector.shape_cast %44 : vector<1x1x256xf32> to vector<1x256xf32>
    %46 = vector.shape_cast %43 : vector<1x256xf32> to vector<1x1x256xf32>
    tpu.vector_store %arg9[%c0_25, %c0_26, %c0_27], %46 {strides = array<i32>} : memref<1x1x256xf32, #tpu.memory_space<vmem>>, vector<1x1x256xf32>,
    %cst_28 = arith.constant dense<0.000000e+00> : vector<1x4xf32>
    %47 = tpu.matmul %43, %1, %cst_28 {dimension_numbers = #tpu.dot_dimension_numbers<[1], [1], [0], [0], [0, 0, 1, 0], [], []>} : vector<1x256xf32>, vector<4x256xf32>, vector<1x4xf32> -> vector<1x4xf32>
    %c0_29 = arith.constant 0 : index
    %c0_30 = arith.constant 0 : index
    %48 = vector.load %arg6[%c0_29, %c0_30] : memref<4x128xf32, #tpu.memory_space<vmem>>, vector<4x128xf32>
    %cst_31 = arith.constant dense<0.000000e+00> : vector<1x128xf32>
    %49 = tpu.matmul %47, %48, %cst_31 {dimension_numbers = #tpu.dot_dimension_numbers<[1], [0], [0], [1], [0, 0, 1, 1], [], []>} : vector<1x4xf32>, vector<4x128xf32>, vector<1x128xf32> -> vector<1x128xf32>
    %c0_32 = arith.constant 0 : index
    %c0_33 = arith.constant 0 : index
    %c0_34 = arith.constant 0 : index
    %50 = vector.load %arg10[%c0_32, %c0_33, %c0_34] : memref<1x1x128xf32, #tpu.memory_space<vmem>>, vector<1x1x128xf32>
    %51 = vector.shape_cast %50 : vector<1x1x128xf32> to vector<1x128xf32>
    %52 = vector.shape_cast %49 : vector<1x128xf32> to vector<1x1x128xf32>
    tpu.vector_store %arg10[%c0_32, %c0_33, %c0_34], %52 {strides = array<i32>} : memref<1x1x128xf32, #tpu.memory_space<vmem>>, vector<1x1x128xf32>,
    %53 = vector.broadcast %28 : vector<1x256xf32> to vector<32x256xf32>
    %54 = arith.mulf %16, %53 : vector<32x256xf32>
    %cst_35 = arith.constant dense<0.000000e+00> : vector<32x32xf32>
    %55 = tpu.matmul %54, %16, %cst_35 {dimension_numbers = #tpu.dot_dimension_numbers<[1], [1], [0], [0], [0, 0, 1, 0], [], []>} : vector<32x256xf32>, vector<32x256xf32>, vector<32x32xf32> -> vector<32x32xf32>
    %c0_36 = arith.constant 0 : index
    %c0_37 = arith.constant 0 : index
    %c0_38 = arith.constant 0 : index
    %56 = vector.load %arg11[%c0_36, %c0_37, %c0_38] : memref<1x32x32xf32, #tpu.memory_space<vmem>>, vector<1x32x32xf32>
    %57 = vector.shape_cast %56 : vector<1x32x32xf32> to vector<32x32xf32>
    %58 = vector.shape_cast %55 : vector<32x32xf32> to vector<1x32x32xf32>
    tpu.vector_store %arg11[%c0_36, %c0_37, %c0_38], %58 {strides = array<i32>} : memref<1x32x32xf32, #tpu.memory_space<vmem>>, vector<1x32x32xf32>,
    %cst_39 = arith.constant dense<0.000000e+00> : vector<1x32xf32>
    %59 = tpu.matmul %28, %16, %cst_39 {dimension_numbers = #tpu.dot_dimension_numbers<[1], [1], [0], [0], [0, 0, 1, 0], [], []>} : vector<1x256xf32>, vector<32x256xf32>, vector<1x32xf32> -> vector<1x32xf32>
    %c0_40 = arith.constant 0 : index
    %c0_41 = arith.constant 0 : index
    %c0_42 = arith.constant 0 : index
    %60 = vector.load %arg12[%c0_40, %c0_41, %c0_42] : memref<1x1x32xf32, #tpu.memory_space<vmem>>, vector<1x1x32xf32>
    %61 = vector.shape_cast %60 : vector<1x1x32xf32> to vector<1x32xf32>
    %62 = vector.shape_cast %59 : vector<1x32xf32> to vector<1x1x32xf32>
    tpu.vector_store %arg12[%c0_40, %c0_41, %c0_42], %62 {strides = array<i32>} : memref<1x1x32xf32, #tpu.memory_space<vmem>>, vector<1x1x32xf32>,
    return
  }
  func.func @transform_0(%arg0: i32) -> (i32, i32, i32) {
    %c0_i32 = arith.constant 0 : i32
    %c0_i32_0 = arith.constant 0 : i32
    %c0_i32_1 = arith.constant 0 : i32
    return %arg0, %c0_i32, %c0_i32_0 : i32, i32, i32
  }
  func.func @transform_1(%arg0: i32) -> (i32, i32) {
    %c0_i32 = arith.constant 0 : i32
    %c0_i32_0 = arith.constant 0 : i32
    %c0_i32_1 = arith.constant 0 : i32
    return %c0_i32, %c0_i32_0 : i32, i32
  }
  func.func @transform_2(%arg0: i32) -> (i32, i32) {
    %c0_i32 = arith.constant 0 : i32
    %c0_i32_0 = arith.constant 0 : i32
    %c0_i32_1 = arith.constant 0 : i32
    return %c0_i32, %c0_i32_0 : i32, i32
  }
  func.func @transform_3(%arg0: i32) -> (i32, i32) {
    %c0_i32 = arith.constant 0 : i32
    %c0_i32_0 = arith.constant 0 : i32
    %c0_i32_1 = arith.constant 0 : i32
    return %c0_i32, %c0_i32_0 : i32, i32
  }
  func.func @transform_4(%arg0: i32) -> (i32, i32) {
    %c0_i32 = arith.constant 0 : i32
    %c0_i32_0 = arith.constant 0 : i32
    %c0_i32_1 = arith.constant 0 : i32
    return %c0_i32, %c0_i32_0 : i32, i32
  }
  func.func @transform_5(%arg0: i32) -> (i32, i32) {
    %c0_i32 = arith.constant 0 : i32
    %c0_i32_0 = arith.constant 0 : i32
    %c0_i32_1 = arith.constant 0 : i32
    return %c0_i32, %c0_i32_0 : i32, i32
  }
  func.func @transform_6(%arg0: i32) -> (i32, i32, i32) {
    %c0_i32 = arith.constant 0 : i32
    %c0_i32_0 = arith.constant 0 : i32
    %c0_i32_1 = arith.constant 0 : i32
    return %arg0, %c0_i32, %c0_i32_0 : i32, i32, i32
  }
  func.func @transform_7(%arg0: i32) -> (i32, i32, i32) {
    %c0_i32 = arith.constant 0 : i32
    %c0_i32_0 = arith.constant 0 : i32
    %c0_i32_1 = arith.constant 0 : i32
    return %arg0, %c0_i32, %c0_i32_0 : i32, i32, i32
  }
  func.func @transform_8(%arg0: i32) -> (i32, i32, i32) {
    %c0_i32 = arith.constant 0 : i32
    %c0_i32_0 = arith.constant 0 : i32
    %c0_i32_1 = arith.constant 0 : i32
    return %arg0, %c0_i32, %c0_i32_0 : i32, i32, i32
  }
  func.func @transform_9(%arg0: i32) -> (i32, i32, i32) {
    %c0_i32 = arith.constant 0 : i32
    %c0_i32_0 = arith.constant 0 : i32
    %c0_i32_1 = arith.constant 0 : i32
    return %arg0, %c0_i32, %c0_i32_0 : i32, i32, i32
  }
  func.func @transform_10(%arg0: i32) -> (i32, i32, i32) {
    %c0_i32 = arith.constant 0 : i32
    %c0_i32_0 = arith.constant 0 : i32
    %c0_i32_1 = arith.constant 0 : i32
    return %arg0, %c0_i32, %c0_i32_0 : i32, i32, i32
  }
  func.func @transform_11(%arg0: i32) -> (i32, i32, i32) {
    %c0_i32 = arith.constant 0 : i32
    %c0_i32_0 = arith.constant 0 : i32
    %c0_i32_1 = arith.constant 0 : i32
    return %arg0, %c0_i32, %c0_i32_0 : i32, i32, i32
  }
}

</mosaic_0001>

<llo_original>
// kernel: schema_net_predictor.1
$region0: #{schema_net_predictor.1}
  #allocation0 [shape = 'u32[]', space=smem, size = 0x4, offset = 0x4, fixed_abs, tag = 'smem constant byte address 0x4 - core index']
  #allocation1 [shape = 'u32[144,128]{1,0:T(1,128)}', space=vmem, size = 0x12000, scoped, tag = 'internal scratch']
  %s0 = inlined_call_operand.vmem [shape: f32[2,4,256], index: 0, kind: input, shape index: {}]
  %s1 = inlined_call_operand.vmem [shape: f32[32,4], index: 1, kind: input, shape index: {}]
  %s2 = inlined_call_operand.vmem [shape: f32[32,1], index: 2, kind: input, shape index: {}]
  %s3 = inlined_call_operand.hbm [shape: f32[1,4], index: 3, kind: input, shape index: {}]
  %s4 = inlined_call_operand.hbm [shape: f32[1,4], index: 4, kind: input, shape index: {}]
  %s5 = inlined_call_operand.vmem [shape: f32[4,128], index: 5, kind: input, shape index: {}]
  %s6 = inlined_call_operand.hbm [shape: f32[2,32,256], index: 6, kind: output, shape index: {0}]
  %s7 = inlined_call_operand.hbm [shape: f32[2,1,256], index: 7, kind: output, shape index: {1}]
  %s8 = inlined_call_operand.vmem [shape: f32[2,1,256], index: 8, kind: output, shape index: {2}]
  %s9 = inlined_call_operand.hbm [shape: f32[2,1,128], index: 9, kind: output, shape index: {3}]
  %s10 = inlined_call_operand.vmem [shape: f32[2,32,32], index: 10, kind: output, shape index: {4}]
  %s11 = inlined_call_operand.vmem [shape: f32[2,1,32], index: 11, kind: output, shape index: {5}]
  %12 = xla_tuple %s6, %s7, %s8, %s9, %s10, %s11
  %s13 = sld [smem:[#allocation0]]
  $region105: #{schema_net_predictor.1} parent=0
    _
  %s15 = ssub.s32 1, %s13
  %s16 = scalar_select 0, %s15, %s13
  $region1: #{schema_net_predictor.1} parent=0
    #allocation2 [shape = 'u8[512]{0}', space=vmem, size = 0x400, scoped, tag = 'input window, operand 3, single buffered']
    #allocation3 [shape = 's32[2]{0}', space=sflag, size = 0x8, scoped, tag = 'scoped memory for schema_net_predictor.1']
    #allocation4 [shape = 's32[2]{0}', space=sflag, size = 0x8, scoped, tag = 'scoped memory for schema_net_predictor.1']
    #allocation5 [shape = 'u8[512]{0}', space=vmem, size = 0x400, scoped, tag = 'input window, operand 4, single buffered']
    #allocation6 [shape = 's32[1]{0}', space=sflag, size = 0x4, scoped, tag = 'scoped memory for schema_net_predictor.1']
    #allocation7 [shape = 'u8[65536]{0}', space=vmem, size = 0x10000, scoped, tag = 'output window, operand 0']
    #allocation8 [shape = 'u8[2048]{0}', space=vmem, size = 0x800, scoped, tag = 'output window, operand 1']
    #allocation9 [shape = 's32[2]{0}', space=sflag, size = 0x8, scoped, tag = 'scoped memory for schema_net_predictor.1']
    #allocation10 [shape = 'u8[1024]{0}', space=vmem, size = 0x400, scoped, tag = 'output window, operand 3']
    %17 = vsyncpa [#allocation3], 0
    %18 = vsyncpa [#allocation6], 0
    %19 = vsyncpa [#allocation4], 0
    %s20 = scalar_lea.sflag [#allocation4], 1
    %21 = vsyncpa %s20, 0
    %22 = vsyncpa [#allocation9], 0
    %s23 = scalar_lea.sflag [#allocation9], 1
    %24 = vsyncpa %s23, 0
    loop: start=0, step=1, limit=4
    $region2: #{schema_net_predictor.1} parent=1 // loop_pre_header
      _
    $region3: #{schema_net_predictor.1} parent=1 // loop_header
      %s26 = sphi 0, %s30
      %p27 = scmp.ge.s32.totalorder %s26, 4
      %s36 = sphi 0, %s38
      %s39 = sphi 0, %s36
      %s40 = sphi 0, %s39
      %s56 = sphi 0, %s40
      %s60 = sphi 0, %s60
      %s62 = sphi 0, %s60
      %s63 = sphi 0, %s62
      %s77 = sphi 0, %s63
      %s81 = sphi 0, %s81
      %s83 = sphi 0, %s81
      %s84 = sphi 0, %s83
      %s98 = sphi 0, %s84
      %s102 = sphi 0, %s102
      %s104 = sphi 0, %s102
      %s105 = sphi 0, %s104
      %s119 = sphi 0, %s105
      %s123 = sphi 0, %s123
      %s125 = sphi 0, %s123
      %s126 = sphi 0, %s125
      %s140 = sphi 0, %s126
      %s144 = sphi 0, %s144
      %s146 = sphi 0, %s144
      %s147 = sphi 0, %s146
      %s161 = sphi 0, %s147
      %s167 = sphi 0, %s169
      %s170 = sphi 0, %s167
      %s171 = sphi 0, %s170
      %s187 = sphi 0, %s171
      %s193 = sphi 0, %s195
      %s196 = sphi 0, %s193
      %s197 = sphi 0, %s196
      %s213 = sphi 0, %s197
      %s219 = sphi 0, %s221
      %s222 = sphi 0, %s219
      %s223 = sphi 0, %s222
      %s239 = sphi 0, %s223
      %s245 = sphi 0, %s247
      %s248 = sphi 0, %s245
      %s249 = sphi 0, %s248
      %s265 = sphi 0, %s249
      %s271 = sphi 0, %s273
      %s274 = sphi 0, %s271
      %s275 = sphi 0, %s274
      %s291 = sphi 0, %s275
      %s297 = sphi 0, %s299
      %s300 = sphi 0, %s297
      %s301 = sphi 0, %s300
      %s317 = sphi 0, %s301
    $region4: #{schema_net_predictor.1} parent=1 // loop_header_branch
      %29 = sbr.rel (%p27) target = $region8
    $region5: #{schema_net_predictor.1} parent=1 // loop_body
      %s31 = ssub.s32 %s26, 1
      %s32 = ssub.s32 %s26, 2
      %s33 = sadd.s32 %s26, 1
      %s34 = ssub.s32 %s26, %s33
      %p35 = scmp.eq.s32.totalorder %s34, 0
      %s37 = sadd.s32 %s36, 1
      %s38 = scalar_select %p35, %s36, %s37
      %p41 = pneg %p35
      %p42 = scmp.eq.s32.totalorder %s26, 1
      %p43 = por %p41, %p42
      %p44 = scmp.ne.s32.totalorder %s36, %s39
      %p45 = scmp.eq.s32.totalorder %s26, 0
      %p46 = por %p44, %p45
      %p47 = scmp.ne.s32.totalorder %s36, %s39
      %p48 = scmp.eq.s32.totalorder %s31, 1
      %p49 = por %p47, %p48
      %p50 = scmp.ne.s32.totalorder %s39, %s40
      %p51 = scmp.eq.s32.totalorder %s31, 0
      %p52 = por %p50, %p51
      %p53 = scmp.ne.s32.totalorder %s39, %s40
      %p54 = scmp.eq.s32.totalorder %s32, 1
      %p55 = por %p53, %p54
      %p57 = scmp.ne.s32.totalorder %s40, %s56
      %p58 = scmp.eq.s32.totalorder %s32, 0
      %p59 = por %p57, %p58
      %s61 = sadd.s32 %s60, 1
      %p64 = scmp.eq.s32.totalorder %s26, 1
      %p65 = scmp.ne.s32.totalorder %s60, %s62
      %p66 = scmp.eq.s32.totalorder %s26, 0
      %p67 = por %p65, %p66
      %p68 = scmp.ne.s32.totalorder %s60, %s62
      %p69 = scmp.eq.s32.totalorder %s31, 1
      %p70 = por %p68, %p69
      %p71 = scmp.ne.s32.totalorder %s62, %s63
      %p72 = scmp.eq.s32.totalorder %s31, 0
      %p73 = por %p71, %p72
      %p74 = scmp.ne.s32.totalorder %s62, %s63
      %p75 = scmp.eq.s32.totalorder %s32, 1
      %p76 = por %p74, %p75
      %p78 = scmp.ne.s32.totalorder %s63, %s77
      %p79 = scmp.eq.s32.totalorder %s32, 0
      %p80 = por %p78, %p79
      %s82 = sadd.s32 %s81, 1
      %p85 = scmp.eq.s32.totalorder %s26, 1
      %p86 = scmp.ne.s32.totalorder %s81, %s83
      %p87 = scmp.eq.s32.totalorder %s26, 0
      %p88 = por %p86, %p87
      %p89 = scmp.ne.s32.totalorder %s81, %s83
      %p90 = scmp.eq.s32.totalorder %s31, 1
      %p91 = por %p89, %p90
      %p92 = scmp.ne.s32.totalorder %s83, %s84
      %p93 = scmp.eq.s32.totalorder %s31, 0
      %p94 = por %p92, %p93
      %p95 = scmp.ne.s32.totalorder %s83, %s84
      %p96 = scmp.eq.s32.totalorder %s32, 1
      %p97 = por %p95, %p96
      %p99 = scmp.ne.s32.totalorder %s84, %s98
      %p100 = scmp.eq.s32.totalorder %s32, 0
      %p101 = por %p99, %p100
      %s103 = sadd.s32 %s102, 1
      %p106 = scmp.eq.s32.totalorder %s26, 1
      %p107 = scmp.ne.s32.totalorder %s102, %s104
      %p108 = scmp.eq.s32.totalorder %s26, 0
      %p109 = por %p107, %p108
      %p110 = scmp.ne.s32.totalorder %s102, %s104
      %p111 = scmp.eq.s32.totalorder %s31, 1
      %p112 = por %p110, %p111
      %p113 = scmp.ne.s32.totalorder %s104, %s105
      %p114 = scmp.eq.s32.totalorder %s31, 0
      %p115 = por %p113, %p114
      %p116 = scmp.ne.s32.totalorder %s104, %s105
      %p117 = scmp.eq.s32.totalorder %s32, 1
      %p118 = por %p116, %p117
      %p120 = scmp.ne.s32.totalorder %s105, %s119
      %p121 = scmp.eq.s32.totalorder %s32, 0
      %p122 = por %p120, %p121
      %s124 = sadd.s32 %s123, 1
      %p127 = scmp.eq.s32.totalorder %s26, 1
      %p128 = scmp.ne.s32.totalorder %s123, %s125
      %p129 = scmp.eq.s32.totalorder %s26, 0
      %p130 = por %p128, %p129
      %p131 = scmp.ne.s32.totalorder %s123, %s125
      %p132 = scmp.eq.s32.totalorder %s31, 1
      %p133 = por %p131, %p132
      %p134 = scmp.ne.s32.totalorder %s125, %s126
      %p135 = scmp.eq.s32.totalorder %s31, 0
      %p136 = por %p134, %p135
      %p137 = scmp.ne.s32.totalorder %s125, %s126
      %p138 = scmp.eq.s32.totalorder %s32, 1
      %p139 = por %p137, %p138
      %p141 = scmp.ne.s32.totalorder %s126, %s140
      %p142 = scmp.eq.s32.totalorder %s32, 0
      %p143 = por %p141, %p142
      %s145 = sadd.s32 %s144, 1
      %p148 = scmp.eq.s32.totalorder %s26, 1
      %p149 = scmp.ne.s32.totalorder %s144, %s146
      %p150 = scmp.eq.s32.totalorder %s26, 0
      %p151 = por %p149, %p150
      %p152 = scmp.ne.s32.totalorder %s144, %s146
      %p153 = scmp.eq.s32.totalorder %s31, 1
      %p154 = por %p152, %p153
      %p155 = scmp.ne.s32.totalorder %s146, %s147
      %p156 = scmp.eq.s32.totalorder %s31, 0
      %p157 = por %p155, %p156
      %p158 = scmp.ne.s32.totalorder %s146, %s147
      %p159 = scmp.eq.s32.totalorder %s32, 1
      %p160 = por %p158, %p159
      %p162 = scmp.ne.s32.totalorder %s147, %s161
      %p163 = scmp.eq.s32.totalorder %s32, 0
      %p164 = por %p162, %p163
      %s165 = ssub.s32 %s26, %s33
      %p166 = scmp.eq.s32.totalorder %s165, 0
      %s168 = sadd.s32 %s167, 1
      %s169 = scalar_select %p166, %s167, %s168
      %p172 = pneg %p166
      %p173 = scmp.eq.s32.totalorder %s26, 1
      %p174 = por %p172, %p173
      %p175 = scmp.ne.s32.totalorder %s167, %s170
      %p176 = scmp.eq.s32.totalorder %s26, 0
      %p177 = por %p175, %p176
      %p178 = scmp.ne.s32.totalorder %s167, %s170
      %p179 = scmp.eq.s32.totalorder %s31, 1
      %p180 = por %p178, %p179
      %p181 = scmp.ne.s32.totalorder %s170, %s171
      %p182 = scmp.eq.s32.totalorder %s31, 0
      %p183 = por %p181, %p182
      %p184 = scmp.ne.s32.totalorder %s170, %s171
      %p185 = scmp.eq.s32.totalorder %s32, 1
      %p186 = por %p184, %p185
      %p188 = scmp.ne.s32.totalorder %s171, %s187
      %p189 = scmp.eq.s32.totalorder %s32, 0
      %p190 = por %p188, %p189
      %s191 = ssub.s32 %s26, %s33
      %p192 = scmp.eq.s32.totalorder %s191, 0
      %s194 = sadd.s32 %s193, 1
      %s195 = scalar_select %p192, %s193, %s194
      %p198 = pneg %p192
      %p199 = scmp.eq.s32.totalorder %s26, 1
      %p200 = por %p198, %p199
      %p201 = scmp.ne.s32.totalorder %s193, %s196
      %p202 = scmp.eq.s32.totalorder %s26, 0
      %p203 = por %p201, %p202
      %p204 = scmp.ne.s32.totalorder %s193, %s196
      %p205 = scmp.eq.s32.totalorder %s31, 1
      %p206 = por %p204, %p205
      %p207 = scmp.ne.s32.totalorder %s196, %s197
      %p208 = scmp.eq.s32.totalorder %s31, 0
      %p209 = por %p207, %p208
      %p210 = scmp.ne.s32.totalorder %s196, %s197
      %p211 = scmp.eq.s32.totalorder %s32, 1
      %p212 = por %p210, %p211
      %p214 = scmp.ne.s32.totalorder %s197, %s213
      %p215 = scmp.eq.s32.totalorder %s32, 0
      %p216 = por %p214, %p215
      %s217 = ssub.s32 %s26, %s33
      %p218 = scmp.eq.s32.totalorder %s217, 0
      %s220 = sadd.s32 %s219, 1
      %s221 = scalar_select %p218, %s219, %s220
      %p224 = pneg %p218
      %p225 = scmp.eq.s32.totalorder %s26, 1
      %p226 = por %p224, %p225
      %p227 = scmp.ne.s32.totalorder %s219, %s222
      %p228 = scmp.eq.s32.totalorder %s26, 0
      %p229 = por %p227, %p228
      %p230 = scmp.ne.s32.totalorder %s219, %s222
      %p231 = scmp.eq.s32.totalorder %s31, 1
      %p232 = por %p230, %p231
      %p233 = scmp.ne.s32.totalorder %s222, %s223
      %p234 = scmp.eq.s32.totalorder %s31, 0
      %p235 = por %p233, %p234
      %p236 = scmp.ne.s32.totalorder %s222, %s223
      %p237 = scmp.eq.s32.totalorder %s32, 1
      %p238 = por %p236, %p237
      %p240 = scmp.ne.s32.totalorder %s223, %s239
      %p241 = scmp.eq.s32.totalorder %s32, 0
      %p242 = por %p240, %p241
      %s243 = ssub.s32 %s26, %s33
      %p244 = scmp.eq.s32.totalorder %s243, 0
      %s246 = sadd.s32 %s245, 1
      %s247 = scalar_select %p244, %s245, %s246
      %p250 = pneg %p244
      %p251 = scmp.eq.s32.totalorder %s26, 1
      %p252 = por %p250, %p251
      %p253 = scmp.ne.s32.totalorder %s245, %s248
      %p254 = scmp.eq.s32.totalorder %s26, 0
      %p255 = por %p253, %p254
      %p256 = scmp.ne.s32.totalorder %s245, %s248
      %p257 = scmp.eq.s32.totalorder %s31, 1
      %p258 = por %p256, %p257
      %p259 = scmp.ne.s32.totalorder %s248, %s249
      %p260 = scmp.eq.s32.totalorder %s31, 0
      %p261 = por %p259, %p260
      %p262 = scmp.ne.s32.totalorder %s248, %s249
      %p263 = scmp.eq.s32.totalorder %s32, 1
      %p264 = por %p262, %p263
      %p266 = scmp.ne.s32.totalorder %s249, %s265
      %p267 = scmp.eq.s32.totalorder %s32, 0
      %p268 = por %p266, %p267
      %s269 = ssub.s32 %s26, %s33
      %p270 = scmp.eq.s32.totalorder %s269, 0
      %s272 = sadd.s32 %s271, 1
      %s273 = scalar_select %p270, %s271, %s272
      %p276 = pneg %p270
      %p277 = scmp.eq.s32.totalorder %s26, 1
      %p278 = por %p276, %p277
      %p279 = scmp.ne.s32.totalorder %s271, %s274
      %p280 = scmp.eq.s32.totalorder %s26, 0
      %p281 = por %p279, %p280
      %p282 = scmp.ne.s32.totalorder %s271, %s274
      %p283 = scmp.eq.s32.totalorder %s31, 1
      %p284 = por %p282, %p283
      %p285 = scmp.ne.s32.totalorder %s274, %s275
      %p286 = scmp.eq.s32.totalorder %s31, 0
      %p287 = por %p285, %p286
      %p288 = scmp.ne.s32.totalorder %s274, %s275
      %p289 = scmp.eq.s32.totalorder %s32, 1
      %p290 = por %p288, %p289
      %p292 = scmp.ne.s32.totalorder %s275, %s291
      %p293 = scmp.eq.s32.totalorder %s32, 0
      %p294 = por %p292, %p293
      %s295 = ssub.s32 %s26, %s33
      %p296 = scmp.eq.s32.totalorder %s295, 0
      %s298 = sadd.s32 %s297, 1
      %s299 = scalar_select %p296, %s297, %s298
      %p302 = pneg %p296
      %p303 = scmp.eq.s32.totalorder %s26, 1
      %p304 = por %p302, %p303
      %p305 = scmp.ne.s32.totalorder %s297, %s300
      %p306 = scmp.eq.s32.totalorder %s26, 0
      %p307 = por %p305, %p306
      %p308 = scmp.ne.s32.totalorder %s297, %s300
      %p309 = scmp.eq.s32.totalorder %s31, 1
      %p310 = por %p308, %p309
      %p311 = scmp.ne.s32.totalorder %s300, %s301
      %p312 = scmp.eq.s32.totalorder %s31, 0
      %p313 = por %p311, %p312
      %p314 = scmp.ne.s32.totalorder %s300, %s301
      %p315 = scmp.eq.s32.totalorder %s32, 1
      %p316 = por %p314, %p315
      %p318 = scmp.ne.s32.totalorder %s301, %s317
      %p319 = scmp.eq.s32.totalorder %s32, 0
      %p320 = por %p318, %p319
      %p321 = scmp.le.s32.totalorder 1, %s26
      %p322 = scmp.lt.s32.totalorder %s26, 3
      %p323 = pnand %p321, %p322
      %p324 = pneg %p323
      // Predicated region
      $region9: #{schema_net_predictor.1} parent=5 // pred_check
        _
      $region10: #{schema_net_predictor.1} parent=5 // pred_check_branch
        %326 = sbr.rel (%p323) target = $region12
      $region11: #{schema_net_predictor.1} parent=5 // pred_region
        %s327 = ssub.s32 %s26, 1
        // Predicated region
        $region13: #{schema_net_predictor.1} parent=11 // pred_check
          %p328 = pneg %p73
        $region14: #{schema_net_predictor.1} parent=11 // pred_check_branch
          %330 = sbr.rel (%p328) target = $region16
        $region15: #{schema_net_predictor.1} parent=11 // pred_region
          _
        $region16: #{schema_net_predictor.1} parent=11 // pred_fallthru
          _
        // Predicated region
        $region17: #{schema_net_predictor.1} parent=11 // pred_check
          %p331 = pneg %p94
        $region18: #{schema_net_predictor.1} parent=11 // pred_check_branch
          %333 = sbr.rel (%p331) target = $region20
        $region19: #{schema_net_predictor.1} parent=11 // pred_region
          _
        $region20: #{schema_net_predictor.1} parent=11 // pred_fallthru
          _
        // Predicated region
        $region21: #{schema_net_predictor.1} parent=11 // pred_check
          %p334 = pneg %p115
        $region22: #{schema_net_predictor.1} parent=11 // pred_check_branch
          %336 = sbr.rel (%p334) target = $region24
        $region23: #{schema_net_predictor.1} parent=11 // pred_region
          %s338 = ssub.s32 16, 16
          %339 = vsyncadd [#allocation3], %s338
          %s341 = sshll.u32 [#allocation2], 4
          %s342 = int_to_ptr.vmem [resolvable:$true] %s341
          %344 = dma.hbm_to_vmem [thread:$0]  %s3, 16, %s342, [#allocation3]
        $region24: #{schema_net_predictor.1} parent=11 // pred_fallthru
          _
        // Predicated region
        $region25: #{schema_net_predictor.1} parent=11 // pred_check
          %p345 = pneg %p136
        $region26: #{schema_net_predictor.1} parent=11 // pred_check_branch
          %347 = sbr.rel (%p345) target = $region28
        $region27: #{schema_net_predictor.1} parent=11 // pred_region
          %s349 = ssub.s32 16, 16
          %350 = vsyncadd [#allocation6], %s349
          %s352 = sshll.u32 [#allocation5], 4
          %s353 = int_to_ptr.vmem [resolvable:$true] %s352
          %355 = dma.hbm_to_vmem [thread:$0]  %s4, 16, %s353, [#allocation6]
        $region28: #{schema_net_predictor.1} parent=11 // pred_fallthru
          _
        // Predicated region
        $region29: #{schema_net_predictor.1} parent=11 // pred_check
          %p356 = pneg %p157
        $region30: #{schema_net_predictor.1} parent=11 // pred_check_branch
          %358 = sbr.rel (%p356) target = $region32
        $region31: #{schema_net_predictor.1} parent=11 // pred_region
          _
        $region32: #{schema_net_predictor.1} parent=11 // pred_fallthru
          _
      $region12: #{schema_net_predictor.1} parent=5 // pred_fallthru
        _
      %p359 = scmp.lt.s32.totalorder %s26, 2
      // Predicated region
      $region33: #{schema_net_predictor.1} parent=5 // pred_check
        %p360 = pneg %p359
      $region34: #{schema_net_predictor.1} parent=5 // pred_check_branch
        %362 = sbr.rel (%p360) target = $region36
      $region35: #{schema_net_predictor.1} parent=5 // pred_region
        // Predicated region
        $region37: #{schema_net_predictor.1} parent=35 // pred_check
          %p363 = pneg %p46
        $region38: #{schema_net_predictor.1} parent=35 // pred_check_branch
          %365 = sbr.rel (%p363) target = $region40
        $region39: #{schema_net_predictor.1} parent=35 // pred_region
          %p366 = scmp.lt.s32.totalorder %s26, 1
          %s367 = scalar_select %p366, %s26, 1
          %s368 = smul.addr %s367, 2
          %s369 = smul.addr %s368, 4
          %s370 = scalar_lea.vmem %s0, %s369
        $region40: #{schema_net_predictor.1} parent=35 // pred_fallthru
          _
      $region36: #{schema_net_predictor.1} parent=5 // pred_fallthru
        _
      %p371 = scmp.le.s32.totalorder 1, %s26
      %p372 = scmp.lt.s32.totalorder %s26, 3
      %p373 = pnand %p371, %p372
      %p374 = pneg %p373
      // Predicated region
      $region41: #{schema_net_predictor.1} parent=5 // pred_check
        _
      $region42: #{schema_net_predictor.1} parent=5 // pred_check_branch
        %376 = sbr.rel (%p373) target = $region44
      $region43: #{schema_net_predictor.1} parent=5 // pred_region
        %s377 = ssub.s32 %s26, 1
        // Predicated region
        $region45: #{schema_net_predictor.1} parent=43 // pred_check
          %p378 = pneg %p115
        $region46: #{schema_net_predictor.1} parent=43 // pred_check_branch
          %380 = sbr.rel (%p378) target = $region48
        $region47: #{schema_net_predictor.1} parent=43 // pred_region
          %381 = dma.done [#allocation3], 16
        $region48: #{schema_net_predictor.1} parent=43 // pred_fallthru
          _
        // Predicated region
        $region49: #{schema_net_predictor.1} parent=43 // pred_check
          %p382 = pneg %p136
        $region50: #{schema_net_predictor.1} parent=43 // pred_check_branch
          %384 = sbr.rel (%p382) target = $region52
        $region51: #{schema_net_predictor.1} parent=43 // pred_region
          %385 = dma.done [#allocation6], 16
        $region52: #{schema_net_predictor.1} parent=43 // pred_fallthru
          _
        %p386 = scmp.lt.s32.totalorder %s31, 1
        %s387 = scalar_select %p386, %s31, 1
        %s388 = smul.addr %s387, 2
        %s389 = smul.addr %s388, 4
        %s390 = scalar_lea.vmem %s0, %s389
        %p391 = pneg %p52
        %p392 = pneg %p49
        %p393 = pneg %p73
        %p394 = pneg %p70
        %p395 = pneg %p94
        %p396 = pneg %p91
        %p397 = pneg %p115
        %p398 = pneg %p112
        %p399 = pneg %p136
        %p400 = pneg %p133
        %p401 = pneg %p157
        %p402 = pneg %p154
        %p403 = pneg %p183
        %p404 = pneg %p180
        %s405 = sand.u32 %s170, 1
        %s406 = scalar_lea.sflag [#allocation4], %s405
        %s407 = sand.u32 %s170, 1
        %s408 = smul.addr %s407, 64
        %s409 = scalar_lea.vmem [#allocation7], %s408
        %p410 = pneg %p209
        %p411 = pneg %p206
        %s412 = sand.u32 %s31, 1
        %s413 = scalar_lea.sflag [#allocation9], %s412
        %s414 = sand.u32 %s196, 1
        %s415 = smul.addr %s414, 2
        %s416 = scalar_lea.vmem [#allocation8], %s415
        %p417 = pneg %p235
        %p418 = pneg %p232
        %p419 = scmp.lt.s32.totalorder %s31, 1
        %s420 = scalar_select %p419, %s31, 1
        %s421 = smul.addr %s420, 2
        %s422 = scalar_lea.vmem %s8, %s421
        %p423 = pneg %p261
        %p424 = pneg %p258
        %s425 = sand.u32 %s31, 1
        %s426 = scalar_lea.sflag [#allocation9], %s425
        %s427 = sand.u32 %s248, 1
        %s428 = scalar_lea.vmem [#allocation10], %s427
        %p429 = pneg %p287
        %p430 = pneg %p284
        %p431 = scmp.lt.s32.totalorder %s31, 1
        %s432 = scalar_select %p431, %s31, 1
        %s433 = smul.addr %s432, 4
        %s434 = smul.addr %s433, 8
        %s435 = scalar_lea.vmem %s10, %s434
        %p436 = pneg %p313
        %p437 = pneg %p310
        %p438 = scmp.lt.s32.totalorder %s31, 1
        %s439 = scalar_select %p438, %s31, 1
        %s440 = scalar_lea.vmem %s11, %s439
        %p441 = scmp.lt.s32.totalorder %s31, 1
        %s442 = scalar_select %p441, %s31, 1
        %s443 = smul.addr %s442, 2
        %s444 = smul.addr %s443, 4
        %s445 = scalar_lea.vmem %s0, %s444
        %p446 = scmp.lt.s32.totalorder %s31, 1
        %s447 = scalar_select %p446, %s31, 1
        %s448 = smul.addr %s447, 2
        %s449 = scalar_lea.vmem %s8, %s448
        %p450 = scmp.lt.s32.totalorder %s31, 1
        %s451 = scalar_select %p450, %s31, 1
        %s452 = smul.addr %s451, 4
        %s453 = smul.addr %s452, 8
        %s454 = scalar_lea.vmem %s10, %s453
        %p455 = scmp.lt.s32.totalorder %s31, 1
        %s456 = scalar_select %p455, %s31, 1
        %s457 = scalar_lea.vmem %s11, %s456
        %v458 = vld [vmem:[%s445] sm:$0xff]
        %v459 = vld [vmem:[%s1] sm:$0xff]
        %v460 = vld [vmem:[%s1 + $0x8] sm:$0xff]
        %v461 = vld [vmem:[%s1 + $0x10] sm:$0xff]
        %v462 = vld [vmem:[%s1 + $0x18] sm:$0xff]
        %v463 = vld [vmem:[%s2] sm:$0xff]
        %v464 = vld [vmem:[%s2 + $0x8] sm:$0xff]
        %v465 = vld [vmem:[%s2 + $0x10] sm:$0xff]
        %v466 = vld [vmem:[%s2 + $0x18] sm:$0xff]
        %468 = vset.pattern.permute.xlu0 0
        %469 = vperm.xlu0 %468, %v463
        %v470 = vpop.permute.xlu0 %469
        %473 = vset.pattern.permute.xlu0 0
        %474 = vperm.xlu0 %473, %v464
        %v475 = vpop.permute.xlu0 %474
        %478 = vset.pattern.permute.xlu0 0
        %479 = vperm.xlu0 %478, %v465
        %v480 = vpop.permute.xlu0 %479
        %483 = vset.pattern.permute.xlu0 0
        %484 = vperm.xlu0 %483, %v466
        %v485 = vpop.permute.xlu0 %484
        %v488 = vcombine.high %v458, %v458
        %vm489 = vcmask 31744
        %v491 = vsel %vm489, %v459, 0
        %v494 = vsel %vm489, %v460, 0
        %v497 = vsel %vm489, %v461, 0
        %v500 = vsel %vm489, %v462, 0
        %vm502 = vcmask 1043456
        %v503 = vsel %vm502, %v458, 0
        %v505 = vsel %vm502, %v488, 0
        %507 = vmatprep.subr.mxu0 %v505
        %508 = vmatpush1.msra.mxu0 %v503
        %509 = vmatprep.subr.mxu0 0.0
        %510 = vmatpush1.msra.mxu0 0.0
        %511 = vmatprep.subr.mxu0 0.0
        %512 = vmatpush1.msra.mxu0 0.0
        %513 = vmatprep.subr.mxu0 0.0
        %514 = vmatpush1.msra.mxu0 0.0
        %515 = vmatprep.subr.mxu0 0.0
        %516 = vmatpush1.msra.mxu0 0.0
        %517 = vmatprep.subr.mxu0 0.0
        %518 = vmatpush1.msra.mxu0 0.0
        %519 = vmatprep.subr.mxu0 0.0
        %520 = vmatpush1.msra.mxu0 0.0
        %521 = vmatprep.subr.mxu0 0.0
        %522 = vmatpush1.msra.mxu0 0.0
        %523 = vmatprep.subr.mxu0 0.0
        %524 = vmatpush1.msra.mxu0 0.0
        %525 = vmatprep.subr.mxu0 0.0
        %526 = vmatpush1.msra.mxu0 0.0
        %527 = vmatprep.subr.mxu0 0.0
        %528 = vmatpush1.msra.mxu0 0.0
        %529 = vmatprep.subr.mxu0 0.0
        %530 = vmatpush1.msra.mxu0 0.0
        %531 = vmatprep.subr.mxu0 0.0
        %532 = vmatpush1.msra.mxu0 0.0
        %533 = vmatprep.subr.mxu0 0.0
        %534 = vmatpush1.msra.mxu0 0.0
        %535 = vmatprep.subr.mxu0 0.0
        %536 = vmatpush1.msra.mxu0 0.0
        %537 = vmatprep.subr.mxu0 0.0
        %538 = vmatpush1.msra.mxu0 0.0
        %539 = vmatprep.subr.mxu0 0.0
        %540 = vmatpush1.msra.mxu0 0.0
        %541 = vmatprep.subr.mxu0 0.0
        %542 = vmatpush1.msra.mxu0 0.0
        %543 = vmatprep.subr.mxu0 0.0
        %544 = vmatpush1.msra.mxu0 0.0
        %545 = vmatprep.subr.mxu0 0.0
        %546 = vmatpush1.msra.mxu0 0.0
        %547 = vmatprep.subr.mxu0 0.0
        %548 = vmatpush1.msra.mxu0 0.0
        %549 = vmatprep.subr.mxu0 0.0
        %550 = vmatpush1.msra.mxu0 0.0
        %551 = vmatprep.subr.mxu0 0.0
        %552 = vmatpush1.msra.mxu0 0.0
        %553 = vmatprep.subr.mxu0 0.0
        %554 = vmatpush1.msra.mxu0 0.0
        %555 = vmatprep.subr.mxu0 0.0
        %556 = vmatpush1.msra.mxu0 0.0
        %557 = vmatprep.subr.mxu0 0.0
        %558 = vmatpush1.msra.mxu0 0.0
        %559 = vmatprep.subr.mxu0 0.0
        %560 = vmatpush1.msra.mxu0 0.0
        %561 = vmatprep.subr.mxu0 0.0
        %562 = vmatpush1.msra.mxu0 0.0
        %563 = vmatprep.subr.mxu0 0.0
        %564 = vmatpush1.msra.mxu0 0.0
        %565 = vmatprep.subr.mxu0 0.0
        %566 = vmatpush1.msra.mxu0 0.0
        %567 = vmatprep.subr.mxu0 0.0
        %568 = vmatpush1.msra.mxu0 0.0
        %569 = vmatprep.subr.mxu0 0.0
        %570 = vmatpush1.msra.mxu0 0.0
        %571 = vmatprep.mubr.f32.mxu0 0.0
        %572 = vmatmul.mubr.f32.gmra.mrb[0].mxu0 %v491
        %v573 = vpop.f32.mrb[0].mxu0
        %v574 = vadd.f32 %v470, %v573
        %v575 = vpop.f32.mrb[0].mxu0
        %v576 = vadd.f32 %v470, %v575
        %577 = vmatprep.mubr.f32.mxu0 0.0
        %578 = vmatmul.mubr.f32.gmra.mrb[0].mxu0 %v494
        %v579 = vpop.f32.mrb[0].mxu0
        %v580 = vadd.f32 %v475, %v579
        %v581 = vpop.f32.mrb[0].mxu0
        %v582 = vadd.f32 %v475, %v581
        %583 = vmatprep.mubr.f32.mxu0 0.0
        %584 = vmatmul.mubr.f32.gmra.mrb[0].mxu0 %v497
        %v585 = vpop.f32.mrb[0].mxu0
        %v586 = vadd.f32 %v480, %v585
        %v587 = vpop.f32.mrb[0].mxu0
        %v588 = vadd.f32 %v480, %v587
        %589 = vmatprep.mubr.f32.mxu0 0.0
        %590 = vmatmul.mubr.f32.gmra.mrb[0].mxu0 %v500
        %v591 = vpop.f32.mrb[0].mxu0
        %v592 = vadd.f32 %v485, %v591
        %v593 = vpop.f32.mrb[0].mxu0
        %v594 = vadd.f32 %v485, %v593
        %595 = vdwg.mxu0
        %v596 = vmax.f32 %v574, %v586
        %v597 = vmax.f32 %v580, %v592
        %v598 = vmax.f32 %v596, %v597
        %v599 = vrot.slane %v598, 4
        %v600 = vmax.f32 %v598, %v599
        %v601 = vrot.slane %v600, 2
        %v602 = vmax.f32 %v600, %v601
        %v603 = vrot.slane %v602, 1
        %v604 = vmax.f32 %v602, %v603
        %v605 = vmax.f32 %v576, %v588
        %v606 = vmax.f32 %v582, %v594
        %v607 = vmax.f32 %v605, %v606
        %v608 = vrot.slane %v607, 4
        %v609 = vmax.f32 %v607, %v608
        %v610 = vrot.slane %v609, 2
        %v611 = vmax.f32 %v609, %v610
        %v612 = vrot.slane %v611, 1
        %v613 = vmax.f32 %v611, %v612
        %v614 = vsub.f32 %v574, %v604
        %v615 = vsub.f32 %v576, %v613
        %v616 = vsub.f32 %v580, %v604
        %v617 = vsub.f32 %v582, %v613
        %v618 = vsub.f32 %v586, %v604
        %v619 = vsub.f32 %v588, %v613
        %v620 = vsub.f32 %v592, %v604
        %v621 = vsub.f32 %v594, %v613
        %v622 = vmul.f32 %v614, 1.442695
        %v623 = vpow.pop %v622
        %v624 = vmul.f32 %v615, 1.442695
        %v625 = vpow.pop %v624
        %v626 = vmul.f32 %v616, 1.442695
        %v627 = vpow.pop %v626
        %v628 = vmul.f32 %v617, 1.442695
        %v629 = vpow.pop %v628
        %v630 = vmul.f32 %v618, 1.442695
        %v631 = vpow.pop %v630
        %v632 = vmul.f32 %v619, 1.442695
        %v633 = vpow.pop %v632
        %v634 = vmul.f32 %v620, 1.442695
        %v635 = vpow.pop %v634
        %v636 = vmul.f32 %v621, 1.442695
        %v637 = vpow.pop %v636
        %v638 = vadd.f32 %v623, %v627
        %v639 = vadd.f32 %v638, %v631
        %v640 = vadd.f32 %v639, %v635
        %v641 = vrot.slane %v640, 4
        %v642 = vadd.f32 %v640, %v641
        %v643 = vrot.slane %v642, 2
        %v644 = vadd.f32 %v642, %v643
        %v645 = vrot.slane %v644, 1
        %v646 = vadd.f32 %v644, %v645
        %v647 = vadd.f32 %v625, %v629
        %v648 = vadd.f32 %v647, %v633
        %v649 = vadd.f32 %v648, %v637
        %v650 = vrot.slane %v649, 4
        %v651 = vadd.f32 %v649, %v650
        %v652 = vrot.slane %v651, 2
        %v653 = vadd.f32 %v651, %v652
        %v654 = vrot.slane %v653, 1
        %v655 = vadd.f32 %v653, %v654
        %v656 = vrcp.pop %v646
        %v657 = vrcp.pop %v655
        %v658 = vmul.f32 %v623, %v656
        %v659 = vmul.f32 %v625, %v657
        %v660 = vmul.f32 %v627, %v656
        %v661 = vmul.f32 %v629, %v657
        %v662 = vmul.f32 %v631, %v656
        %v663 = vmul.f32 %v633, %v657
        %v664 = vmul.f32 %v635, %v656
        %v665 = vmul.f32 %v637, %v657
        %666 = vst [vmem:[%s409] sm:$0xff] %v658
        %667 = vst [vmem:[%s409 + $0x8] sm:$0xff] %v659
        %668 = vst [vmem:[%s409 + $0x10] sm:$0xff] %v660
        %669 = vst [vmem:[%s409 + $0x18] sm:$0xff] %v661
        %670 = vst [vmem:[%s409 + $0x20] sm:$0xff] %v662
        %671 = vst [vmem:[%s409 + $0x28] sm:$0xff] %v663
        %672 = vst [vmem:[%s409 + $0x30] sm:$0xff] %v664
        %673 = vst [vmem:[%s409 + $0x38] sm:$0xff] %v665
        %v674 = vld [vmem:[#allocation2] sm:$0x1]
        %v676 = vsel %vm489, %v674, 0
        %678 = vmatprep.subr.mxu0 %v505
        %679 = vmatpush1.msra.mxu0 %v503
        %680 = vmatprep.subr.mxu0 0.0
        %681 = vmatpush1.msra.mxu0 0.0
        %682 = vmatprep.subr.mxu0 0.0
        %683 = vmatpush1.msra.mxu0 0.0
        %684 = vmatprep.subr.mxu0 0.0
        %685 = vmatpush1.msra.mxu0 0.0
        %686 = vmatprep.subr.mxu0 0.0
        %687 = vmatpush1.msra.mxu0 0.0
        %688 = vmatprep.subr.mxu0 0.0
        %689 = vmatpush1.msra.mxu0 0.0
        %690 = vmatprep.subr.mxu0 0.0
        %691 = vmatpush1.msra.mxu0 0.0
        %692 = vmatprep.subr.mxu0 0.0
        %693 = vmatpush1.msra.mxu0 0.0
        %694 = vmatprep.subr.mxu0 0.0
        %695 = vmatpush1.msra.mxu0 0.0
        %696 = vmatprep.subr.mxu0 0.0
        %697 = vmatpush1.msra.mxu0 0.0
        %698 = vmatprep.subr.mxu0 0.0
        %699 = vmatpush1.msra.mxu0 0.0
        %700 = vmatprep.subr.mxu0 0.0
        %701 = vmatpush1.msra.mxu0 0.0
        %702 = vmatprep.subr.mxu0 0.0
        %703 = vmatpush1.msra.mxu0 0.0
        %704 = vmatprep.subr.mxu0 0.0
        %705 = vmatpush1.msra.mxu0 0.0
        %706 = vmatprep.subr.mxu0 0.0
        %707 = vmatpush1.msra.mxu0 0.0
        %708 = vmatprep.subr.mxu0 0.0
        %709 = vmatpush1.msra.mxu0 0.0
        %710 = vmatprep.subr.mxu0 0.0
        %711 = vmatpush1.msra.mxu0 0.0
        %712 = vmatprep.subr.mxu0 0.0
        %713 = vmatpush1.msra.mxu0 0.0
        %714 = vmatprep.subr.mxu0 0.0
        %715 = vmatpush1.msra.mxu0 0.0
        %716 = vmatprep.subr.mxu0 0.0
        %717 = vmatpush1.msra.mxu0 0.0
        %718 = vmatprep.subr.mxu0 0.0
        %719 = vmatpush1.msra.mxu0 0.0
        %720 = vmatprep.subr.mxu0 0.0
        %721 = vmatpush1.msra.mxu0 0.0
        %722 = vmatprep.subr.mxu0 0.0
        %723 = vmatpush1.msra.mxu0 0.0
        %724 = vmatprep.subr.mxu0 0.0
        %725 = vmatpush1.msra.mxu0 0.0
        %726 = vmatprep.subr.mxu0 0.0
        %727 = vmatpush1.msra.mxu0 0.0
        %728 = vmatprep.subr.mxu0 0.0
        %729 = vmatpush1.msra.mxu0 0.0
        %730 = vmatprep.subr.mxu0 0.0
        %731 = vmatpush1.msra.mxu0 0.0
        %732 = vmatprep.subr.mxu0 0.0
        %733 = vmatpush1.msra.mxu0 0.0
        %734 = vmatprep.subr.mxu0 0.0
        %735 = vmatpush1.msra.mxu0 0.0
        %736 = vmatprep.subr.mxu0 0.0
        %737 = vmatpush1.msra.mxu0 0.0
        %738 = vmatprep.subr.mxu0 0.0
        %739 = vmatpush1.msra.mxu0 0.0
        %740 = vmatprep.subr.mxu0 0.0
        %741 = vmatpush1.msra.mxu0 0.0
        %742 = vmatprep.mubr.f32.mxu0 0.0
        %743 = vmatmul.mubr.f32.gmra.mrb[0].mxu0 %v676
        %v744 = vpop.f32.mrb[0].mxu0
        %v745 = vadd.f32 0.0, %v744
        %v746 = vpop.f32.mrb[0].mxu0
        %v747 = vadd.f32 0.0, %v746
        %748 = vdwg.mxu0
        %v749 = vmul.f32 %v745, 0.5
        %v750 = vmul.f32 %v747, 0.5
        %v751 = vtanh.pop %v749
        %v752 = vtanh.pop %v750
        %v753 = vadd.f32 %v751, 1.0
        %v754 = vadd.f32 %v752, 1.0
        %v755 = vmul.f32 %v753, 0.5
        %v756 = vmul.f32 %v754, 0.5
        %v759 = vcombine.low %v755, %v756
        %v761 = vunpack.c.l.s4 1966171168
        %v762 = vunpack.c.0.s8 %v761
        %v763 = vlaneseq
        %v764 = vshrl.u32 %v763, 7
        %v765 = vsub.s32 %v762, %v764
        %v766 = vrot.slane %v759, %v765
        %v768 = vunpack.c.l.s4 1966171168
        %v769 = vunpack.c.0.s8 %v768
        %v770 = vlaneseq
        %v771 = vshrl.u32 %v770, 7
        %v772 = vsub.s32 %v769, %v771
        %v773 = vrot.slane %v766, %v772
        %v775 = vlaneseq
        %vm776 = vcmp.ge.s32.totalorder %v775, 0
        %vm777 = vcmp.lt.s32.totalorder %v775, 256
        %vm778 = vmand %vm776, %vm777
        %779 = vst.msk [vmem:[%s416] sm:$0x3] %vm778, %v773
        %v780 = vld [vmem:[#allocation5] sm:$0x1]
        %v782 = vsel %vm489, %v780, 0
        %784 = vmatprep.subr.mxu0 %v505
        %785 = vmatpush1.msra.mxu0 %v503
        %786 = vmatprep.subr.mxu0 0.0
        %787 = vmatpush1.msra.mxu0 0.0
        %788 = vmatprep.subr.mxu0 0.0
        %789 = vmatpush1.msra.mxu0 0.0
        %790 = vmatprep.subr.mxu0 0.0
        %791 = vmatpush1.msra.mxu0 0.0
        %792 = vmatprep.subr.mxu0 0.0
        %793 = vmatpush1.msra.mxu0 0.0
        %794 = vmatprep.subr.mxu0 0.0
        %795 = vmatpush1.msra.mxu0 0.0
        %796 = vmatprep.subr.mxu0 0.0
        %797 = vmatpush1.msra.mxu0 0.0
        %798 = vmatprep.subr.mxu0 0.0
        %799 = vmatpush1.msra.mxu0 0.0
        %800 = vmatprep.subr.mxu0 0.0
        %801 = vmatpush1.msra.mxu0 0.0
        %802 = vmatprep.subr.mxu0 0.0
        %803 = vmatpush1.msra.mxu0 0.0
        %804 = vmatprep.subr.mxu0 0.0
        %805 = vmatpush1.msra.mxu0 0.0
        %806 = vmatprep.subr.mxu0 0.0
        %807 = vmatpush1.msra.mxu0 0.0
        %808 = vmatprep.subr.mxu0 0.0
        %809 = vmatpush1.msra.mxu0 0.0
        %810 = vmatprep.subr.mxu0 0.0
        %811 = vmatpush1.msra.mxu0 0.0
        %812 = vmatprep.subr.mxu0 0.0
        %813 = vmatpush1.msra.mxu0 0.0
        %814 = vmatprep.subr.mxu0 0.0
        %815 = vmatpush1.msra.mxu0 0.0
        %816 = vmatprep.subr.mxu0 0.0
        %817 = vmatpush1.msra.mxu0 0.0
        %818 = vmatprep.subr.mxu0 0.0
        %819 = vmatpush1.msra.mxu0 0.0
        %820 = vmatprep.subr.mxu0 0.0
        %821 = vmatpush1.msra.mxu0 0.0
        %822 = vmatprep.subr.mxu0 0.0
        %823 = vmatpush1.msra.mxu0 0.0
        %824 = vmatprep.subr.mxu0 0.0
        %825 = vmatpush1.msra.mxu0 0.0
        %826 = vmatprep.subr.mxu0 0.0
        %827 = vmatpush1.msra.mxu0 0.0
        %828 = vmatprep.subr.mxu0 0.0
        %829 = vmatpush1.msra.mxu0 0.0
        %830 = vmatprep.subr.mxu0 0.0
        %831 = vmatpush1.msra.mxu0 0.0
        %832 = vmatprep.subr.mxu0 0.0
        %833 = vmatpush1.msra.mxu0 0.0
        %834 = vmatprep.subr.mxu0 0.0
        %835 = vmatpush1.msra.mxu0 0.0
        %836 = vmatprep.subr.mxu0 0.0
        %837 = vmatpush1.msra.mxu0 0.0
        %838 = vmatprep.subr.mxu0 0.0
        %839 = vmatpush1.msra.mxu0 0.0
        %840 = vmatprep.subr.mxu0 0.0
        %841 = vmatpush1.msra.mxu0 0.0
        %842 = vmatprep.subr.mxu0 0.0
        %843 = vmatpush1.msra.mxu0 0.0
        %844 = vmatprep.subr.mxu0 0.0
        %845 = vmatpush1.msra.mxu0 0.0
        %846 = vmatprep.subr.mxu0 0.0
        %847 = vmatpush1.msra.mxu0 0.0
        %848 = vmatprep.mubr.f32.mxu0 0.0
        %849 = vmatmul.mubr.f32.gmra.mrb[0].mxu0 %v782
        %v850 = vpop.f32.mrb[0].mxu0
        %v851 = vadd.f32 0.0, %v850
        %v852 = vpop.f32.mrb[0].mxu0
        %v853 = vadd.f32 0.0, %v852
        %854 = vdwg.mxu0
        %vm855 = vcmask 1040384
        %v856 = vsel %vm855, %v851, -inf
        %v857 = vsel %vm855, %v853, -inf
        %v858 = vmax.f32 %v856, %v857
        %859 = vmax.xlane.f32.xlu0 %v858
        %v860 = vpop.xlane.xlu0 %859
        %v861 = vsub.f32 %v851, %v860
        %v862 = vsub.f32 %v853, %v860
        %v863 = vmul.f32 %v861, 1.442695
        %v864 = vpow.pop %v863
        %v865 = vmul.f32 %v862, 1.442695
        %v866 = vpow.pop %v865
        %v867 = vsel %vm855, %v864, 0.0
        %v868 = vsel %vm855, %v866, 0.0
        %v869 = vadd.f32 %v867, %v868
        %870 = vadd.xlane.f32.xlu0 %v869
        %v871 = vpop.xlane.xlu0 %870
        %v872 = vrcp.pop %v871
        %v873 = vmul.f32 %v864, %v872
        %v874 = vmul.f32 %v866, %v872
        %v877 = vcombine.low %v873, %v874
        %v879 = vunpack.c.l.s4 1966171168
        %v880 = vunpack.c.0.s8 %v879
        %v881 = vlaneseq
        %v882 = vshrl.u32 %v881, 7
        %v883 = vsub.s32 %v880, %v882
        %v884 = vrot.slane %v877, %v883
        %v886 = vunpack.c.l.s4 1966171168
        %v887 = vunpack.c.0.s8 %v886
        %v888 = vlaneseq
        %v889 = vshrl.u32 %v888, 7
        %v890 = vsub.s32 %v887, %v889
        %v891 = vrot.slane %v884, %v890
        %893 = vst.msk [vmem:[%s449] sm:$0x3] %vm778, %v891
        %895 = vmatprep.subr.mxu0 %v488
        %896 = vmatpush1.xpose.msra.mxu0 %v458
        %897 = vmatprep.subr.mxu0 0.0
        %898 = vmatpush1.xpose.msra.mxu0 0.0
        %899 = vmatprep.subr.mxu0 0.0
        %900 = vmatpush1.xpose.msra.mxu0 0.0
        %901 = vmatprep.subr.mxu0 0.0
        %902 = vmatpush1.xpose.msra.mxu0 0.0
        %903 = vmatprep.subr.mxu0 0.0
        %904 = vmatpush1.xpose.msra.mxu0 0.0
        %905 = vmatprep.subr.mxu0 0.0
        %906 = vmatpush1.xpose.msra.mxu0 0.0
        %907 = vmatprep.subr.mxu0 0.0
        %908 = vmatpush1.xpose.msra.mxu0 0.0
        %909 = vmatprep.subr.mxu0 0.0
        %910 = vmatpush1.xpose.msra.mxu0 0.0
        %911 = vmatprep.subr.mxu0 0.0
        %912 = vmatpush1.xpose.msra.mxu0 0.0
        %913 = vmatprep.subr.mxu0 0.0
        %914 = vmatpush1.xpose.msra.mxu0 0.0
        %915 = vmatprep.subr.mxu0 0.0
        %916 = vmatpush1.xpose.msra.mxu0 0.0
        %917 = vmatprep.subr.mxu0 0.0
        %918 = vmatpush1.xpose.msra.mxu0 0.0
        %919 = vmatprep.subr.mxu0 0.0
        %920 = vmatpush1.xpose.msra.mxu0 0.0
        %921 = vmatprep.subr.mxu0 0.0
        %922 = vmatpush1.xpose.msra.mxu0 0.0
        %923 = vmatprep.subr.mxu0 0.0
        %924 = vmatpush1.xpose.msra.mxu0 0.0
        %925 = vmatprep.subr.mxu0 0.0
        %926 = vmatpush1.xpose.msra.mxu0 0.0
        %927 = vmatprep.subr.mxu0 0.0
        %928 = vmatpush1.xpose.msra.mxu0 0.0
        %929 = vmatprep.subr.mxu0 0.0
        %930 = vmatpush1.xpose.msra.mxu0 0.0
        %931 = vmatprep.subr.mxu0 0.0
        %932 = vmatpush1.xpose.msra.mxu0 0.0
        %933 = vmatprep.subr.mxu0 0.0
        %934 = vmatpush1.xpose.msra.mxu0 0.0
        %935 = vmatprep.subr.mxu0 0.0
        %936 = vmatpush1.xpose.msra.mxu0 0.0
        %937 = vmatprep.subr.mxu0 0.0
        %938 = vmatpush1.xpose.msra.mxu0 0.0
        %939 = vmatprep.subr.mxu0 0.0
        %940 = vmatpush1.xpose.msra.mxu0 0.0
        %941 = vmatprep.subr.mxu0 0.0
        %942 = vmatpush1.xpose.msra.mxu0 0.0
        %943 = vmatprep.subr.mxu0 0.0
        %944 = vmatpush1.xpose.msra.mxu0 0.0
        %945 = vmatprep.subr.mxu0 0.0
        %946 = vmatpush1.xpose.msra.mxu0 0.0
        %947 = vmatprep.subr.mxu0 0.0
        %948 = vmatpush1.xpose.msra.mxu0 0.0
        %949 = vmatprep.subr.mxu0 0.0
        %950 = vmatpush1.xpose.msra.mxu0 0.0
        %951 = vmatprep.subr.mxu0 0.0
        %952 = vmatpush1.xpose.msra.mxu0 0.0
        %953 = vmatprep.subr.mxu0 0.0
        %954 = vmatpush1.xpose.msra.mxu0 0.0
        %955 = vmatprep.subr.mxu0 0.0
        %956 = vmatpush1.xpose.msra.mxu0 0.0
        %957 = vmatprep.subr.mxu0 0.0
        %958 = vmatpush1.xpose.msra.mxu0 0.0
        %959 = vmatprep.mubr.f32.mxu0 %v874
        %960 = vmatmul.mubr.f32.gmra.mrb[0].mxu0 %v873
        %v961 = vpop.f32.mrb[0].mxu0
        %v962 = vadd.f32 0.0, %v961
        %v963 = vpop.f32.mrb[0].mxu0
        %964 = vdwg.mxu0
        %v965 = vld [vmem:[%s5] sm:$0xf]
        %v967 = vsel %vm489, %v962, 0
        %v970 = vsel %vm502, %v965, 0
        %972 = vmatprep.subr.mxu0 0.0
        %973 = vmatpush1.msra.mxu0 %v970
        %974 = vmatprep.subr.mxu0 0.0
        %975 = vmatpush1.msra.mxu0 0.0
        %976 = vmatprep.subr.mxu0 0.0
        %977 = vmatpush1.msra.mxu0 0.0
        %978 = vmatprep.subr.mxu0 0.0
        %979 = vmatpush1.msra.mxu0 0.0
        %980 = vmatprep.subr.mxu0 0.0
        %981 = vmatpush1.msra.mxu0 0.0
        %982 = vmatprep.subr.mxu0 0.0
        %983 = vmatpush1.msra.mxu0 0.0
        %984 = vmatprep.subr.mxu0 0.0
        %985 = vmatpush1.msra.mxu0 0.0
        %986 = vmatprep.subr.mxu0 0.0
        %987 = vmatpush1.msra.mxu0 0.0
        %988 = vmatprep.subr.mxu0 0.0
        %989 = vmatpush1.msra.mxu0 0.0
        %990 = vmatprep.subr.mxu0 0.0
        %991 = vmatpush1.msra.mxu0 0.0
        %992 = vmatprep.subr.mxu0 0.0
        %993 = vmatpush1.msra.mxu0 0.0
        %994 = vmatprep.subr.mxu0 0.0
        %995 = vmatpush1.msra.mxu0 0.0
        %996 = vmatprep.subr.mxu0 0.0
        %997 = vmatpush1.msra.mxu0 0.0
        %998 = vmatprep.subr.mxu0 0.0
        %999 = vmatpush1.msra.mxu0 0.0
        %1000 = vmatprep.subr.mxu0 0.0
        %1001 = vmatpush1.msra.mxu0 0.0
        %1002 = vmatprep.subr.mxu0 0.0
        %1003 = vmatpush1.msra.mxu0 0.0
        %1004 = vmatprep.subr.mxu0 0.0
        %1005 = vmatpush1.msra.mxu0 0.0
        %1006 = vmatprep.subr.mxu0 0.0
        %1007 = vmatpush1.msra.mxu0 0.0
        %1008 = vmatprep.subr.mxu0 0.0
        %1009 = vmatpush1.msra.mxu0 0.0
        %1010 = vmatprep.subr.mxu0 0.0
        %1011 = vmatpush1.msra.mxu0 0.0
        %1012 = vmatprep.subr.mxu0 0.0
        %1013 = vmatpush1.msra.mxu0 0.0
        %1014 = vmatprep.subr.mxu0 0.0
        %1015 = vmatpush1.msra.mxu0 0.0
        %1016 = vmatprep.subr.mxu0 0.0
        %1017 = vmatpush1.msra.mxu0 0.0
        %1018 = vmatprep.subr.mxu0 0.0
        %1019 = vmatpush1.msra.mxu0 0.0
        %1020 = vmatprep.subr.mxu0 0.0
        %1021 = vmatpush1.msra.mxu0 0.0
        %1022 = vmatprep.subr.mxu0 0.0
        %1023 = vmatpush1.msra.mxu0 0.0
        %1024 = vmatprep.subr.mxu0 0.0
        %1025 = vmatpush1.msra.mxu0 0.0
        %1026 = vmatprep.subr.mxu0 0.0
        %1027 = vmatpush1.msra.mxu0 0.0
        %1028 = vmatprep.subr.mxu0 0.0
        %1029 = vmatpush1.msra.mxu0 0.0
        %1030 = vmatprep.subr.mxu0 0.0
        %1031 = vmatpush1.msra.mxu0 0.0
        %1032 = vmatprep.subr.mxu0 0.0
        %1033 = vmatpush1.msra.mxu0 0.0
        %1034 = vmatprep.subr.mxu0 0.0
        %1035 = vmatpush1.msra.mxu0 0.0
        %1036 = vmatprep.mubr.f32.mxu0 0.0
        %1037 = vmatmul.mubr.f32.gmra.mrb[0].mxu0 %v967
        %v1038 = vpop.f32.mrb[0].mxu0
        %v1039 = vadd.f32 0.0, %v1038
        %v1040 = vpop.f32.mrb[0].mxu0
        %1041 = vdwg.mxu0
        %1042 = vst [vmem:[%s428] sm:$0x1] %v1039
        %v1043 = vlaneseq
        %v1044 = vshrl.u32 %v1043, 7
        %v1045 = vsub.s32 0, %v1044
        %v1046 = vrot.slane %v755, %v1045
        %v1047 = vlaneseq
        %v1048 = vshrl.u32 %v1047, 7
        %v1049 = vsub.s32 0, %v1048
        %v1050 = vrot.slane %v756, %v1049
        %v1051 = vmul.f32 %v658, %v1046
        %v1052 = vmul.f32 %v659, %v1050
        %v1053 = vmul.f32 %v660, %v1046
        %v1054 = vmul.f32 %v661, %v1050
        %v1055 = vmul.f32 %v662, %v1046
        %v1056 = vmul.f32 %v663, %v1050
        %v1057 = vmul.f32 %v664, %v1046
        %v1058 = vmul.f32 %v665, %v1050
        %1059 = vmatprep.subr.mxu0 %v659
        %1060 = vmatpush1.xpose.msra.mxu0 %v658
        %1061 = vmatprep.subr.mxu0 %v661
        %1062 = vmatpush1.xpose.msra.mxu0 %v660
        %1063 = vmatprep.subr.mxu0 %v663
        %1064 = vmatpush1.xpose.msra.mxu0 %v662
        %1065 = vmatprep.subr.mxu0 %v665
        %1066 = vmatpush1.xpose.msra.mxu0 %v664
        %1067 = vmatprep.subr.mxu0 0.0
        %1068 = vmatpush1.xpose.msra.mxu0 0.0
        %1069 = vmatprep.subr.mxu0 0.0
        %1070 = vmatpush1.xpose.msra.mxu0 0.0
        %1071 = vmatprep.subr.mxu0 0.0
        %1072 = vmatpush1.xpose.msra.mxu0 0.0
        %1073 = vmatprep.subr.mxu0 0.0
        %1074 = vmatpush1.xpose.msra.mxu0 0.0
        %1075 = vmatprep.subr.mxu0 0.0
        %1076 = vmatpush1.xpose.msra.mxu0 0.0
        %1077 = vmatprep.subr.mxu0 0.0
        %1078 = vmatpush1.xpose.msra.mxu0 0.0
        %1079 = vmatprep.subr.mxu0 0.0
        %1080 = vmatpush1.xpose.msra.mxu0 0.0
        %1081 = vmatprep.subr.mxu0 0.0
        %1082 = vmatpush1.xpose.msra.mxu0 0.0
        %1083 = vmatprep.subr.mxu0 0.0
        %1084 = vmatpush1.xpose.msra.mxu0 0.0
        %1085 = vmatprep.subr.mxu0 0.0
        %1086 = vmatpush1.xpose.msra.mxu0 0.0
        %1087 = vmatprep.subr.mxu0 0.0
        %1088 = vmatpush1.xpose.msra.mxu0 0.0
        %1089 = vmatprep.subr.mxu0 0.0
        %1090 = vmatpush1.xpose.msra.mxu0 0.0
        %1091 = vmatprep.subr.mxu0 0.0
        %1092 = vmatpush1.xpose.msra.mxu0 0.0
        %1093 = vmatprep.subr.mxu0 0.0
        %1094 = vmatpush1.xpose.msra.mxu0 0.0
        %1095 = vmatprep.subr.mxu0 0.0
        %1096 = vmatpush1.xpose.msra.mxu0 0.0
        %1097 = vmatprep.subr.mxu0 0.0
        %1098 = vmatpush1.xpose.msra.mxu0 0.0
        %1099 = vmatprep.subr.mxu0 0.0
        %1100 = vmatpush1.xpose.msra.mxu0 0.0
        %1101 = vmatprep.subr.mxu0 0.0
        %1102 = vmatpush1.xpose.msra.mxu0 0.0
        %1103 = vmatprep.subr.mxu0 0.0
        %1104 = vmatpush1.xpose.msra.mxu0 0.0
        %1105 = vmatprep.subr.mxu0 0.0
        %1106 = vmatpush1.xpose.msra.mxu0 0.0
        %1107 = vmatprep.subr.mxu0 0.0
        %1108 = vmatpush1.xpose.msra.mxu0 0.0
        %1109 = vmatprep.subr.mxu0 0.0
        %1110 = vmatpush1.xpose.msra.mxu0 0.0
        %1111 = vmatprep.subr.mxu0 0.0
        %1112 = vmatpush1.xpose.msra.mxu0 0.0
        %1113 = vmatprep.subr.mxu0 0.0
        %1114 = vmatpush1.xpose.msra.mxu0 0.0
        %1115 = vmatprep.subr.mxu0 0.0
        %1116 = vmatpush1.xpose.msra.mxu0 0.0
        %1117 = vmatprep.subr.mxu0 0.0
        %1118 = vmatpush1.xpose.msra.mxu0 0.0
        %1119 = vmatprep.subr.mxu0 0.0
        %1120 = vmatpush1.xpose.msra.mxu0 0.0
        %1121 = vmatprep.subr.mxu0 0.0
        %1122 = vmatpush1.xpose.msra.mxu0 0.0
        %1123 = vmatprep.mubr.f32.mxu0 %v1052
        %1124 = vmatmul.mubr.f32.gmra.mrb[0].mxu0 %v1051
        %v1125 = vpop.f32.mrb[0].mxu0
        %v1126 = vadd.f32 0.0, %v1125
        %v1127 = vpop.f32.mrb[0].mxu0
        %1128 = vmatprep.mubr.f32.mxu0 %v1054
        %1129 = vmatmul.mubr.f32.gmra.mrb[0].mxu0 %v1053
        %v1130 = vpop.f32.mrb[0].mxu0
        %v1131 = vadd.f32 0.0, %v1130
        %v1132 = vpop.f32.mrb[0].mxu0
        %1133 = vmatprep.mubr.f32.mxu0 %v1056
        %1134 = vmatmul.mubr.f32.gmra.mrb[0].mxu0 %v1055
        %v1135 = vpop.f32.mrb[0].mxu0
        %v1136 = vadd.f32 0.0, %v1135
        %v1137 = vpop.f32.mrb[0].mxu0
        %1138 = vmatprep.mubr.f32.mxu0 %v1058
        %1139 = vmatmul.mubr.f32.gmra.mrb[0].mxu0 %v1057
        %v1140 = vpop.f32.mrb[0].mxu0
        %v1141 = vadd.f32 0.0, %v1140
        %v1142 = vpop.f32.mrb[0].mxu0
        %1143 = vdwg.mxu0
        %vm1144 = vcmask 261120
        %1145 = vst.msk [vmem:[%s454] sm:$0xff] %vm1144, %v1126
        %1146 = vst.msk [vmem:[%s454 + $0x8] sm:$0xff] %vm1144, %v1131
        %1147 = vst.msk [vmem:[%s454 + $0x10] sm:$0xff] %vm1144, %v1136
        %1148 = vst.msk [vmem:[%s454 + $0x18] sm:$0xff] %vm1144, %v1141
        %1149 = vmatprep.subr.mxu0 %v659
        %1150 = vmatpush1.xpose.msra.mxu0 %v658
        %1151 = vmatprep.subr.mxu0 %v661
        %1152 = vmatpush1.xpose.msra.mxu0 %v660
        %1153 = vmatprep.subr.mxu0 %v663
        %1154 = vmatpush1.xpose.msra.mxu0 %v662
        %1155 = vmatprep.subr.mxu0 %v665
        %1156 = vmatpush1.xpose.msra.mxu0 %v664
        %1157 = vmatprep.subr.mxu0 0.0
        %1158 = vmatpush1.xpose.msra.mxu0 0.0
        %1159 = vmatprep.subr.mxu0 0.0
        %1160 = vmatpush1.xpose.msra.mxu0 0.0
        %1161 = vmatprep.subr.mxu0 0.0
        %1162 = vmatpush1.xpose.msra.mxu0 0.0
        %1163 = vmatprep.subr.mxu0 0.0
        %1164 = vmatpush1.xpose.msra.mxu0 0.0
        %1165 = vmatprep.subr.mxu0 0.0
        %1166 = vmatpush1.xpose.msra.mxu0 0.0
        %1167 = vmatprep.subr.mxu0 0.0
        %1168 = vmatpush1.xpose.msra.mxu0 0.0
        %1169 = vmatprep.subr.mxu0 0.0
        %1170 = vmatpush1.xpose.msra.mxu0 0.0
        %1171 = vmatprep.subr.mxu0 0.0
        %1172 = vmatpush1.xpose.msra.mxu0 0.0
        %1173 = vmatprep.subr.mxu0 0.0
        %1174 = vmatpush1.xpose.msra.mxu0 0.0
        %1175 = vmatprep.subr.mxu0 0.0
        %1176 = vmatpush1.xpose.msra.mxu0 0.0
        %1177 = vmatprep.subr.mxu0 0.0
        %1178 = vmatpush1.xpose.msra.mxu0 0.0
        %1179 = vmatprep.subr.mxu0 0.0
        %1180 = vmatpush1.xpose.msra.mxu0 0.0
        %1181 = vmatprep.subr.mxu0 0.0
        %1182 = vmatpush1.xpose.msra.mxu0 0.0
        %1183 = vmatprep.subr.mxu0 0.0
        %1184 = vmatpush1.xpose.msra.mxu0 0.0
        %1185 = vmatprep.subr.mxu0 0.0
        %1186 = vmatpush1.xpose.msra.mxu0 0.0
        %1187 = vmatprep.subr.mxu0 0.0
        %1188 = vmatpush1.xpose.msra.mxu0 0.0
        %1189 = vmatprep.subr.mxu0 0.0
        %1190 = vmatpush1.xpose.msra.mxu0 0.0
        %1191 = vmatprep.subr.mxu0 0.0
        %1192 = vmatpush1.xpose.msra.mxu0 0.0
        %1193 = vmatprep.subr.mxu0 0.0
        %1194 = vmatpush1.xpose.msra.mxu0 0.0
        %1195 = vmatprep.subr.mxu0 0.0
        %1196 = vmatpush1.xpose.msra.mxu0 0.0
        %1197 = vmatprep.subr.mxu0 0.0
        %1198 = vmatpush1.xpose.msra.mxu0 0.0
        %1199 = vmatprep.subr.mxu0 0.0
        %1200 = vmatpush1.xpose.msra.mxu0 0.0
        %1201 = vmatprep.subr.mxu0 0.0
        %1202 = vmatpush1.xpose.msra.mxu0 0.0
        %1203 = vmatprep.subr.mxu0 0.0
        %1204 = vmatpush1.xpose.msra.mxu0 0.0
        %1205 = vmatprep.subr.mxu0 0.0
        %1206 = vmatpush1.xpose.msra.mxu0 0.0
        %1207 = vmatprep.subr.mxu0 0.0
        %1208 = vmatpush1.xpose.msra.mxu0 0.0
        %1209 = vmatprep.subr.mxu0 0.0
        %1210 = vmatpush1.xpose.msra.mxu0 0.0
        %1211 = vmatprep.subr.mxu0 0.0
        %1212 = vmatpush1.xpose.msra.mxu0 0.0
        %1213 = vmatprep.mubr.f32.mxu0 %v756
        %1214 = vmatmul.mubr.f32.gmra.mrb[0].mxu0 %v755
        %v1215 = vpop.f32.mrb[0].mxu0
        %v1216 = vadd.f32 0.0, %v1215
        %v1217 = vpop.f32.mrb[0].mxu0
        %1218 = vdwg.mxu0
        %vm1219 = vcmask 253952
        %1220 = vst.msk [vmem:[%s457] sm:$0x1] %vm1219, %v1216
        %s1221 = sand.u32 %s170, 1
        %s1222 = scalar_lea.sflag [#allocation4], %s1221
        %s1223 = sand.u32 %s170, 1
        %s1224 = smul.addr %s1223, 64
        %s1225 = scalar_lea.vmem [#allocation7], %s1224
        %s1226 = sand.u32 %s31, 1
        %s1227 = scalar_lea.sflag [#allocation9], %s1226
        %s1228 = sand.u32 %s196, 1
        %s1229 = smul.addr %s1228, 2
        %s1230 = scalar_lea.vmem [#allocation8], %s1229
        %p1231 = scmp.lt.s32.totalorder %s31, 1
        %s1232 = scalar_select %p1231, %s31, 1
        %s1233 = smul.addr %s1232, 2
        %s1234 = scalar_lea.vmem %s8, %s1233
        %s1235 = sand.u32 %s31, 1
        %s1236 = scalar_lea.sflag [#allocation9], %s1235
        %s1237 = sand.u32 %s248, 1
        %s1238 = scalar_lea.vmem [#allocation10], %s1237
        %p1239 = scmp.lt.s32.totalorder %s31, 1
        %s1240 = scalar_select %p1239, %s31, 1
        %s1241 = smul.addr %s1240, 4
        %s1242 = smul.addr %s1241, 8
        %s1243 = scalar_lea.vmem %s10, %s1242
        %p1244 = scmp.lt.s32.totalorder %s31, 1
        %s1245 = scalar_select %p1244, %s31, 1
        %s1246 = scalar_lea.vmem %s11, %s1245
        // Predicated region
        $region53: #{schema_net_predictor.1} parent=43 // pred_check
          %p1247 = pneg %p180
        $region54: #{schema_net_predictor.1} parent=43 // pred_check_branch
          %1249 = sbr.rel (%p1247) target = $region56
        $region55: #{schema_net_predictor.1} parent=43 // pred_region
          %s1251 = ssub.s32 1024, 1024
          %1252 = vsyncadd %s1222, %s1251
          %s1253 = smul.addr %s31, 8
          %s1254 = smul.addr %s1253, 128
          %s1255 = scalar_lea.hbm %s6, %s1254
          %s1256 = sshll.u32 %s1225, 4
          %s1257 = int_to_ptr.vmem [resolvable:$true] %s1256
          %1262 = dma.vmem_to_hbm [thread:$0]  %s1257, 1024, %s1255, %s1222, 256, 256, 16
        $region56: #{schema_net_predictor.1} parent=43 // pred_fallthru
          _
        // Predicated region
        $region57: #{schema_net_predictor.1} parent=43 // pred_check
          %p1263 = pneg %p206
        $region58: #{schema_net_predictor.1} parent=43 // pred_check_branch
          %1265 = sbr.rel (%p1263) target = $region60
        $region59: #{schema_net_predictor.1} parent=43 // pred_region
          %s1267 = ssub.s32 32, 32
          %1268 = vsyncadd %s1227, %s1267
          %s1269 = smul.addr %s31, 2
          %s1270 = smul.addr %s1269, 16
          %s1271 = scalar_lea.hbm %s7, %s1270
          %s1273 = sshll.u32 %s1230, 4
          %s1274 = int_to_ptr.vmem [resolvable:$true] %s1273
          %1276 = dma.vmem_to_hbm [thread:$0]  %s1274, 32, %s1271, %s1227
        $region60: #{schema_net_predictor.1} parent=43 // pred_fallthru
          _
        // Predicated region
        $region61: #{schema_net_predictor.1} parent=43 // pred_check
          %p1277 = pneg %p232
        $region62: #{schema_net_predictor.1} parent=43 // pred_check_branch
          %1279 = sbr.rel (%p1277) target = $region64
        $region63: #{schema_net_predictor.1} parent=43 // pred_region
          _
        $region64: #{schema_net_predictor.1} parent=43 // pred_fallthru
          _
        // Predicated region
        $region65: #{schema_net_predictor.1} parent=43 // pred_check
          %p1280 = pneg %p258
        $region66: #{schema_net_predictor.1} parent=43 // pred_check_branch
          %1282 = sbr.rel (%p1280) target = $region68
        $region67: #{schema_net_predictor.1} parent=43 // pred_region
          %s1284 = ssub.s32 16, 16
          %1285 = vsyncadd %s1236, %s1284
          %s1286 = smul.addr %s31, 16
          %s1287 = scalar_lea.hbm %s9, %s1286
          %s1289 = sshll.u32 %s1238, 4
          %s1290 = int_to_ptr.vmem [resolvable:$true] %s1289
          %1292 = dma.vmem_to_hbm [thread:$0]  %s1290, 16, %s1287, %s1236
        $region68: #{schema_net_predictor.1} parent=43 // pred_fallthru
          _
        // Predicated region
        $region69: #{schema_net_predictor.1} parent=43 // pred_check
          %p1293 = pneg %p284
        $region70: #{schema_net_predictor.1} parent=43 // pred_check_branch
          %1295 = sbr.rel (%p1293) target = $region72
        $region71: #{schema_net_predictor.1} parent=43 // pred_region
          _
        $region72: #{schema_net_predictor.1} parent=43 // pred_fallthru
          _
        // Predicated region
        $region73: #{schema_net_predictor.1} parent=43 // pred_check
          %p1296 = pneg %p310
        $region74: #{schema_net_predictor.1} parent=43 // pred_check_branch
          %1298 = sbr.rel (%p1296) target = $region76
        $region75: #{schema_net_predictor.1} parent=43 // pred_region
          _
        $region76: #{schema_net_predictor.1} parent=43 // pred_fallthru
          _
      $region44: #{schema_net_predictor.1} parent=5 // pred_fallthru
        _
      %p1299 = scmp.le.s32.totalorder 2, %s26
      // Predicated region
      $region77: #{schema_net_predictor.1} parent=5 // pred_check
        %p1300 = pneg %p1299
      $region78: #{schema_net_predictor.1} parent=5 // pred_check_branch
        %1302 = sbr.rel (%p1300) target = $region80
      $region79: #{schema_net_predictor.1} parent=5 // pred_region
        %s1303 = ssub.s32 %s26, 2
        // Predicated region
        $region81: #{schema_net_predictor.1} parent=79 // pred_check
          %p1304 = pneg %p186
        $region82: #{schema_net_predictor.1} parent=79 // pred_check_branch
          %1306 = sbr.rel (%p1304) target = $region84
        $region83: #{schema_net_predictor.1} parent=79 // pred_region
          %s1307 = sand.u32 %s171, 1
          %s1308 = scalar_lea.sflag [#allocation4], %s1307
          %s1309 = sand.u32 %s171, 1
          %s1310 = smul.addr %s1309, 64
          %s1311 = scalar_lea.vmem [#allocation7], %s1310
          %1312 = dma.done %s1308, 1024
        $region84: #{schema_net_predictor.1} parent=79 // pred_fallthru
          _
        // Predicated region
        $region85: #{schema_net_predictor.1} parent=79 // pred_check
          %p1313 = pneg %p212
        $region86: #{schema_net_predictor.1} parent=79 // pred_check_branch
          %1315 = sbr.rel (%p1313) target = $region88
        $region87: #{schema_net_predictor.1} parent=79 // pred_region
          %s1316 = sand.u32 %s32, 1
          %s1317 = scalar_lea.sflag [#allocation9], %s1316
          %s1318 = sand.u32 %s197, 1
          %s1319 = smul.addr %s1318, 2
          %s1320 = scalar_lea.vmem [#allocation8], %s1319
          %1321 = dma.done %s1317, 32
        $region88: #{schema_net_predictor.1} parent=79 // pred_fallthru
          _
        // Predicated region
        $region89: #{schema_net_predictor.1} parent=79 // pred_check
          %p1322 = pneg %p238
        $region90: #{schema_net_predictor.1} parent=79 // pred_check_branch
          %1324 = sbr.rel (%p1322) target = $region92
        $region91: #{schema_net_predictor.1} parent=79 // pred_region
          %p1325 = scmp.lt.s32.totalorder %s32, 1
          %s1326 = scalar_select %p1325, %s32, 1
          %s1327 = smul.addr %s1326, 2
          %s1328 = scalar_lea.vmem %s8, %s1327
        $region92: #{schema_net_predictor.1} parent=79 // pred_fallthru
          _
        // Predicated region
        $region93: #{schema_net_predictor.1} parent=79 // pred_check
          %p1329 = pneg %p264
        $region94: #{schema_net_predictor.1} parent=79 // pred_check_branch
          %1331 = sbr.rel (%p1329) target = $region96
        $region95: #{schema_net_predictor.1} parent=79 // pred_region
          %s1332 = sand.u32 %s32, 1
          %s1333 = scalar_lea.sflag [#allocation9], %s1332
          %s1334 = sand.u32 %s249, 1
          %s1335 = scalar_lea.vmem [#allocation10], %s1334
          %1336 = dma.done %s1333, 16
        $region96: #{schema_net_predictor.1} parent=79 // pred_fallthru
          _
        // Predicated region
        $region97: #{schema_net_predictor.1} parent=79 // pred_check
          %p1337 = pneg %p290
        $region98: #{schema_net_predictor.1} parent=79 // pred_check_branch
          %1339 = sbr.rel (%p1337) target = $region100
        $region99: #{schema_net_predictor.1} parent=79 // pred_region
          %p1340 = scmp.lt.s32.totalorder %s32, 1
          %s1341 = scalar_select %p1340, %s32, 1
          %s1342 = smul.addr %s1341, 4
          %s1343 = smul.addr %s1342, 8
          %s1344 = scalar_lea.vmem %s10, %s1343
        $region100: #{schema_net_predictor.1} parent=79 // pred_fallthru
          _
        // Predicated region
        $region101: #{schema_net_predictor.1} parent=79 // pred_check
          %p1345 = pneg %p316
        $region102: #{schema_net_predictor.1} parent=79 // pred_check_branch
          %1347 = sbr.rel (%p1345) target = $region104
        $region103: #{schema_net_predictor.1} parent=79 // pred_region
          %p1348 = scmp.lt.s32.totalorder %s32, 1
          %s1349 = scalar_select %p1348, %s32, 1
          %s1350 = scalar_lea.vmem %s11, %s1349
        $region104: #{schema_net_predictor.1} parent=79 // pred_fallthru
          _
      $region80: #{schema_net_predictor.1} parent=5 // pred_fallthru
        _
    $region6: #{schema_net_predictor.1} parent=1 // loop_footer
      %s30 = sadd.s32 1, %s26
    $region7: #{schema_net_predictor.1} parent=1 // loop_footer_branch
      %25 = sbr.rel target = $region3
    $region8: #{schema_net_predictor.1} parent=1 // loop_exit
      _
    %1351 = vsyncpa [#allocation3], 1
    %s1352 = scalar_lea.sflag [#allocation3], 1
    %1353 = vsyncpa %s1352, 1
    %1354 = vsyncpa [#allocation6], 1
    %1355 = vsyncpa [#allocation4], 1
    %s1356 = scalar_lea.sflag [#allocation4], 1
    %1357 = vsyncpa %s1356, 1
    %1358 = vsyncpa [#allocation9], 1
    %s1359 = scalar_lea.sflag [#allocation9], 1
    %1360 = vsyncpa %s1359, 1

</llo_original>
